<compile_context>
chip_gen: v7x
topology: tpu7x:2x2x1
jax: 0.10.0
libtpu: 0.0.40
codegen_flags: <defaults>
</compile_context>

<pallas_src>
import functools
import math

import jax
import jax.numpy as jnp
from jax import lax
from jax.experimental import pallas as pl
from jax.experimental.pallas import tpu as pltpu


def _prelu(y, alpha):
    return jnp.where(y >= 0.0, y, alpha * y)


# ---------------------------------------------------------------------------
# stride == 1 kernel (optionally residual), row-chunked depthwise
# ---------------------------------------------------------------------------
def _dw_kernel_s1(x_ref, w1_ref, wdw_ref, w3_ref, aff_ref, o_ref, pad_ref, *,
                  H, W, rb, residual):
    """x_ref  : (1, H*W, pack*in_c)   lane-packed NHWC-flat activations
       w1_ref : (pack*in_c, PG)       block-diag 1x1 conv weights (bf16)
       wdw_ref: (9, PG)               depthwise taps, row k = dh*3 + dw
       w3_ref : (PG, pack*out_c)      block-diag projection weights (bf16)
       aff_ref: (6, PG)               bn1 scale/bias, prelu1, bn2 scale/bias, prelu2
       o_ref  : (1, H*W, pack*out_c)
       pad_ref: (H+2, W+2, PG)        VMEM scratch ('same' padding)
    """
    PG = w1_ref.shape[1]

    aff = aff_ref[...]
    s1, b1, a1 = aff[0:1, :], aff[1:2, :], aff[2:3, :]
    s2, b2, a2 = aff[3:4, :], aff[4:5, :], aff[5:6, :]

    # ---- Conv_block #1: 1x1 conv + folded BN + PReLU (bf16 MXU, f32 acc) ----
    x2d = x_ref[0]                                              # (H*W, pack*in_c)
    y = jnp.dot(x2d.astype(jnp.bfloat16), w1_ref[...],
                preferred_element_type=jnp.float32)             # (H*W, PG)
    y = _prelu(y * s1 + b1, a1)

    # ---- 'same' padding: zero only the 1-wide border ring every step --------
    # (re-done per step so it stays correct when the "parallel" grid axis is
    #  split across TensorCores; interior is fully rewritten below).
    zrow = jnp.zeros((1, W + 2, PG), jnp.float32)
    zcol = jnp.zeros((H + 2, 1, PG), jnp.float32)
    pad_ref[0:1, :, :] = zrow
    pad_ref[H + 1:H + 2, :, :] = zrow
    pad_ref[:, 0:1, :] = zcol
    pad_ref[:, W + 1:W + 2, :] = zcol
    pad_ref[1:H + 1, 1:W + 1, :] = y.reshape(H, W, PG)

    wdw = wdw_ref[...]                                          # (9, PG)
    w3 = w3_ref[...]                                            # (PG, pack*out_c)

    # ---- depthwise 3x3 + BN + PReLU + projection, rb output rows at a time --
    for r0 in range(0, H, rb):
        acc = wdw[0:1, :].reshape(1, 1, PG) * pad_ref[r0:r0 + rb, 0:W, :]
        for k in range(1, 9):
            dh, dw = divmod(k, 3)
            acc = acc + wdw[k:k + 1, :].reshape(1, 1, PG) * \
                pad_ref[r0 + dh:r0 + dh + rb, dw:dw + W, :]
        z = _prelu(acc.reshape(rb * W, PG) * s2 + b2, a2)
        out = jnp.dot(z.astype(jnp.bfloat16), w3,
                      preferred_element_type=jnp.float32)       # (rb*W, pack*out_c)
        if residual:                      # stride==1, in_c==out_c: same layout
            out = out + x2d[r0 * W:(r0 + rb) * W, :]
        o_ref[0, r0 * W:(r0 + rb) * W, :] = out.astype(o_ref.dtype)


# ---------------------------------------------------------------------------
# stride == 2 kernel: parity-plane decomposition (no strided access, no
# selection matmul, 4x fewer depthwise FMAs than computing at full resolution)
# ---------------------------------------------------------------------------
def _dw_kernel_s2(x_ref, w1_ref, wdw_ref, w3_ref, aff_ref, o_ref, pad_ref, *, H, W):
    """x_ref rows are grouped by pixel parity: [ee, eo, oe, oo], each Ho*Wo rows.
       pad_ref: (4, Ho+1, Wo+1, PG) parity planes of the zero-padded activation:
         plane 0 = P_ee[r,c] = padded[2r,   2c  ]
         plane 1 = P_eo[r,c] = padded[2r,   2c+1]
         plane 2 = P_oe[r,c] = padded[2r+1, 2c  ]
         plane 3 = P_oo[r,c] = padded[2r+1, 2c+1]
       Every stride-2 tap window is then a contiguous slice of one plane.
    """
    PG = w1_ref.shape[1]
    Ho, Wo = H // 2, W // 2
    Q = Ho * Wo

    aff = aff_ref[...]
    s1, b1, a1 = aff[0:1, :], aff[1:2, :], aff[2:3, :]
    s2, b2, a2 = aff[3:4, :], aff[4:5, :], aff[5:6, :]

    # ---- Conv_block #1 ------------------------------------------------------
    x2d = x_ref[0]                                              # (H*W, pack*in_c)
    y = jnp.dot(x2d.astype(jnp.bfloat16), w1_ref[...],
                preferred_element_type=jnp.float32)             # (H*W, PG)
    y = _prelu(y * s1 + b1, a1)

    # ---- zero only the border strips that the taps actually read ------------
    zrow = jnp.zeros((1, Wo + 1, PG), jnp.float32)
    zcol = jnp.zeros((Ho + 1, 1, PG), jnp.float32)
    pad_ref[0, 0:1, :, :] = zrow        # P_ee top padding row
    pad_ref[1, 0:1, :, :] = zrow        # P_eo top padding row
    pad_ref[0, :, 0:1, :] = zcol        # P_ee left padding col
    pad_ref[2, :, 0:1, :] = zcol        # P_oe left padding col

    # ---- scatter the four activation parity quadrants into the planes -------
    y_ee = y[0 * Q:1 * Q].reshape(Ho, Wo, PG)
    y_eo = y[1 * Q:2 * Q].reshape(Ho, Wo, PG)
    y_oe = y[2 * Q:3 * Q].reshape(Ho, Wo, PG)
    y_oo = y[3 * Q:4 * Q].reshape(Ho, Wo, PG)
    pad_ref[3, 0:Ho, 0:Wo, :] = y_ee                # P_oo interior
    pad_ref[2, 0:Ho, 1:Wo + 1, :] = y_eo            # P_oe interior
    pad_ref[1, 1:Ho + 1, 0:Wo, :] = y_oe            # P_eo interior
    pad_ref[0, 1:Ho + 1, 1:Wo + 1, :] = y_oo        # P_ee interior

    # ---- depthwise 3x3 at stride-2 output positions: 9 contiguous-slice FMAs
    wdw = wdw_ref[...]

    def tap(k):
        return wdw[k:k + 1, :].reshape(1, 1, PG)

    acc = tap(0) * pad_ref[0, 0:Ho, 0:Wo, :]                  # (dh,dw)=(0,0)
    acc = acc + tap(1) * pad_ref[1, 0:Ho, 0:Wo, :]            # (0,1)
    acc = acc + tap(2) * pad_ref[0, 0:Ho, 1:Wo + 1, :]        # (0,2)
    acc = acc + tap(3) * pad_ref[2, 0:Ho, 0:Wo, :]            # (1,0)
    acc = acc + tap(4) * pad_ref[3, 0:Ho, 0:Wo, :]            # (1,1)
    acc = acc + tap(5) * pad_ref[2, 0:Ho, 1:Wo + 1, :]        # (1,2)
    acc = acc + tap(6) * pad_ref[0, 1:Ho + 1, 0:Wo, :]        # (2,0)
    acc = acc + tap(7) * pad_ref[1, 1:Ho + 1, 0:Wo, :]        # (2,1)
    acc = acc + tap(8) * pad_ref[0, 1:Ho + 1, 1:Wo + 1, :]    # (2,2)

    # ---- BN2 + PReLU2 + Linear_block projection (no BN in its forward) ------
    z = _prelu(acc.reshape(Q, PG) * s2 + b2, a2)
    out = jnp.dot(z.astype(jnp.bfloat16), w3_ref[...],
                  preferred_element_type=jnp.float32)          # (Q, pack*out_c)
    o_ref[0] = out.astype(o_ref.dtype)


# ---------------------------------------------------------------------------
# Wrapper (host-side boundary glue + pallas_call plumbing; x is NCHW)
# ---------------------------------------------------------------------------
def _choose_pack(n, in_c, groups, out_c):
    """Largest divisor of the batch that keeps pack*channels near the 128-lane width."""
    limit = max(1, 128 // max(in_c, groups, out_c))
    pack = 1
    for cand in range(1, min(limit, n) + 1):
        if n % cand == 0:
            pack = cand
    return pack


def depth_wise_forward(x, params, *, stride=2, residual=False, eps=1e-5):
    N, in_c, H, W = x.shape
    groups = params["conv1_w"].shape[0]
    out_c = params["proj_w"].shape[0]
    assert stride in (1, 2), "only the strides Depth_Wise actually uses"
    # TODO(synk): general stride / kernel sizes other than 3x3 with pad 1 are not implemented.
    if residual:
        assert stride == 1 and in_c == out_c, "residual path needs matching shapes"
    if stride == 2:
        assert H % 2 == 0 and W % 2 == 0, "stride-2 parity path assumes even H, W"
        Ho, Wo = H // 2, W // 2
    else:
        Ho, Wo = H, W

    pack = _choose_pack(N, in_c, groups, out_c)
    NB = N // pack
    PIC, PG, POC = pack * in_c, pack * groups, pack * out_c

    # ---- fold eval-mode BatchNorm into per-channel scale/bias at trace time --
    def fold_bn(gamma, beta, mean, var):
        s = gamma / jnp.sqrt(var + eps)
        return s, beta - mean * s

    s1, b1 = fold_bn(*params["bn1"])
    s2, b2 = fold_bn(*params["bn2"])
    aff = jnp.stack([s1, b1, params["prelu1"], s2, b2, params["prelu2"]], 0)
    aff_t = jnp.tile(aff, (1, pack)).astype(jnp.float32)             # (6, PG)

    # ---- 1x1 conv weights as block-diagonal bf16 (lane-packed images share
    #      one MXU matmul; each image's channels stay in its own lane group) --
    w1 = params["conv1_w"].reshape(groups, in_c).T                   # (in_c, groups)
    w3 = params["proj_w"].reshape(out_c, groups).T                   # (groups, out_c)
    eye = jnp.eye(pack, dtype=jnp.float32)
    w1_bd = jnp.kron(eye, w1).astype(jnp.bfloat16)                   # (PIC, PG)
    w3_bd = jnp.kron(eye, w3).astype(jnp.bfloat16)                   # (PG, POC)
    wdw = params["dw_w"].reshape(groups, 9).T                        # (9, groups), row = dh*3+dw
    wdw_t = jnp.tile(wdw, (1, pack)).astype(jnp.float32)             # (9, PG)

    # ---- boundary glue: NCHW -> lane-packed NHWC-flat (+ parity grouping) ---
    x_nhwc = jnp.transpose(x, (0, 2, 3, 1))                          # (N, H, W, C)

    def lane_pack(q, hh, ww):
        q = q.reshape(NB, pack, hh, ww, in_c)
        q = jnp.transpose(q, (0, 2, 3, 1, 4))
        return q.reshape(NB, hh * ww, PIC)

    if stride == 2:
        x_k = jnp.concatenate(
            [lane_pack(x_nhwc[:, 0::2, 0::2, :], Ho, Wo),     # even row, even col
             lane_pack(x_nhwc[:, 0::2, 1::2, :], Ho, Wo),     # even row, odd col
             lane_pack(x_nhwc[:, 1::2, 0::2, :], Ho, Wo),     # odd row, even col
             lane_pack(x_nhwc[:, 1::2, 1::2, :], Ho, Wo)],    # odd row, odd col
            axis=1)                                           # (NB, H*W, PIC)
        kernel = functools.partial(_dw_kernel_s2, H=H, W=W)
        scratch = [pltpu.VMEM((4, Ho + 1, Wo + 1, PG), jnp.float32)]
    else:
        x_k = lane_pack(x_nhwc, H, W)
        rb = 1                                               # output rows per chunk
        for cand in range(1, min(H, 8) + 1):
            if H % cand == 0:
                rb = cand
        kernel = functools.partial(_dw_kernel_s1, H=H, W=W, rb=rb, residual=residual)
        scratch = [pltpu.VMEM((H + 2, W + 2, PG), jnp.float32)]

    Mo = Ho * Wo
    out_flat = pl.pallas_call(
        kernel,
        out_shape=jax.ShapeDtypeStruct((NB, Mo, POC), x.dtype),
        grid=(NB,),
        in_specs=[
            pl.BlockSpec((1, H * W, PIC), lambda i: (i, 0, 0)),
            pl.BlockSpec((PIC, PG), lambda i: (0, 0)),
            pl.BlockSpec((9, PG), lambda i: (0, 0)),
            pl.BlockSpec((PG, POC), lambda i: (0, 0)),
            pl.BlockSpec((6, PG), lambda i: (0, 0)),
        ],
        out_specs=pl.BlockSpec((1, Mo, POC), lambda i: (i, 0, 0)),
        scratch_shapes=scratch,
        compiler_params=pltpu.CompilerParams(
            dimension_semantics=("parallel",)),
    )(x_k, w1_bd, wdw_t, w3_bd, aff_t)

    # ---- boundary glue: unpack lanes / flatten back to NCHW -----------------
    out = out_flat.reshape(NB, Ho, Wo, pack, out_c)
    out = jnp.transpose(out, (0, 3, 4, 1, 2)).reshape(N, out_c, Ho, Wo)
    return out


# ---------------------------------------------------------------------------
# Pure-JAX reference (lax.conv) with the same eval-mode semantics
# ---------------------------------------------------------------------------
def depth_wise_reference(x, params, *, stride=2, residual=False, eps=1e-5):
    def bn(y, p):
        gamma, beta, mean, var = p
        s = gamma / jnp.sqrt(var + eps)
        return y * s.reshape(1, -1, 1, 1) + (beta - mean * s).reshape(1, -1, 1, 1)

    def prelu(y, alpha):
        alpha = alpha.reshape(1, -1, 1, 1)
        return jnp.where(y >= 0.0, y, alpha * y)

    dn = ("NCHW", "OIHW", "NCHW")
    hp = lax.Precision.HIGHEST
    y = lax.conv_general_dilated(x, params["conv1_w"], (1, 1), [(0, 0), (0, 0)],
                                 dimension_numbers=dn, precision=hp)
    y = prelu(bn(y, params["bn1"]), params["prelu1"])
    groups = params["dw_w"].shape[0]
    y = lax.conv_general_dilated(y, params["dw_w"], (stride, stride), [(1, 1), (1, 1)],
                                 dimension_numbers=dn, feature_group_count=groups,
                                 precision=hp)
    y = prelu(bn(y, params["bn2"]), params["prelu2"])
    y = lax.conv_general_dilated(y, params["proj_w"], (1, 1), [(0, 0), (0, 0)],
                                 dimension_numbers=dn, precision=hp)
    if residual:
        y = x + y
    return y


# ---------------------------------------------------------------------------
# Deterministic synthetic parameters (PyTorch-shaped weights)
# ---------------------------------------------------------------------------
def init_depth_wise_params(key, in_c, groups, out_c):
    ks = jax.random.split(key, 7)
    conv1_w = jax.random.normal(ks[0], (groups, in_c, 1, 1), jnp.float32) / math.sqrt(in_c)
    dw_w = jax.random.normal(ks[1], (groups, 1, 3, 3), jnp.float32) / 3.0
    proj_w = jax.random.normal(ks[2], (out_c, groups, 1, 1), jnp.float32) / math.sqrt(groups)

    def init_bn(k, c):
        kg, kb, km, kv = jax.random.split(k, 4)
        gamma = 1.0 + 0.1 * jax.random.normal(kg, (c,), jnp.float32)
        beta = 0.1 * jax.random.normal(kb, (c,), jnp.float32)
        mean = 0.1 * jax.random.normal(km, (c,), jnp.float32)
        var = 0.5 + jax.random.uniform(kv, (c,), jnp.float32)
        return gamma, beta, mean, var

    return {
        "conv1_w": conv1_w,
        "dw_w": dw_w,
        "proj_w": proj_w,
        "bn1": init_bn(ks[3], groups),
        "bn2": init_bn(ks[4], groups),
        "prelu1": jnp.full((groups,), 0.25, jnp.float32)
                  + 0.01 * jax.random.normal(ks[5], (groups,), jnp.float32),
        "prelu2": jnp.full((groups,), 0.25, jnp.float32)
                  + 0.01 * jax.random.normal(ks[6], (groups,), jnp.float32),
    }


if __name__ == "__main__":
    key = jax.random.PRNGKey(0)
    kx1, kp1, kx2, kp2 = jax.random.split(key, 4)

    # Default Depth_Wise config: kernel (3,3), stride (2,2), padding (1,1), no residual.
    in_c, groups, out_c, H, W = 16, 32, 32, 16, 16
    x1 = jax.random.normal(kx1, (2, in_c, H, W), jnp.float32)
    p1 = init_depth_wise_params(kp1, in_c, groups, out_c)
    fwd1 = jax.jit(functools.partial(depth_wise_forward, stride=2, residual=False))
    out1 = jax.block_until_ready(fwd1(x1, p1))
    ref1 = depth_wise_reference(x1, p1, stride=2, residual=False)
    assert out1.shape == (2, out_c, H // 2, W // 2), out1.shape
    assert bool(jnp.all(jnp.isfinite(out1)))
    assert bool(jnp.allclose(out1, ref1, atol=2e-2, rtol=2e-2)), \
        float(jnp.max(jnp.abs(out1 - ref1)))

    # Residual bottleneck config: stride (1,1), in_c == out_c, residual=True.
    in_c2, groups2, out_c2 = 32, 64, 32
    x2 = jax.random.normal(kx2, (2, in_c2, H, W), jnp.float32)
    p2 = init_depth_wise_params(kp2, in_c2, groups2, out_c2)
    fwd2 = jax.jit(functools.partial(depth_wise_forward, stride=1, residual=True))
    out2 = jax.block_until_ready(fwd2(x2, p2))
    ref2 = depth_wise_reference(x2, p2, stride=1, residual=True)
    assert out2.shape == (2, out_c2, H, W), out2.shape
    assert bool(jnp.all(jnp.isfinite(out2)))
    assert bool(jnp.allclose(out2, ref2, atol=2e-2, rtol=2e-2)), \
        float(jnp.max(jnp.abs(out2 - ref2)))

    print("KERNEL_OK")
</pallas_src>

<mosaic_0001>
module attributes {stable_mosaic.version = 11 : i64} {
  func.func @_dw_kernel_s2(%arg0: i32, %arg1: memref<1x256x32xf32, #tpu.memory_space<vmem>>, %arg2: memref<32x64xbf16, #tpu.memory_space<vmem>>, %arg3: memref<9x64xf32, #tpu.memory_space<vmem>>, %arg4: memref<64x64xbf16, #tpu.memory_space<vmem>>, %arg5: memref<6x64xf32, #tpu.memory_space<vmem>>, %arg6: memref<1x64x64xf32, #tpu.memory_space<vmem>>, %arg7: memref<4x9x9x64xf32, #tpu.memory_space<vmem>>) attributes {dimension_semantics = [#tpu.dimension_semantics<parallel>], iteration_bounds = array<i64: 1>, scalar_prefetch = 0 : i64, scratch_operands = 1 : i64, tpu.core_type = #tpu.core_type<tc>, window_params = [{transform_indices = @transform_0, window_bounds = array<i64: 1, 256, 32>}, {pipeline_mode = #tpu.pipeline_mode<synchronous>, transform_indices = @transform_1, window_bounds = array<i64: 32, 64>}, {pipeline_mode = #tpu.pipeline_mode<synchronous>, transform_indices = @transform_2, window_bounds = array<i64: 9, 64>}, {pipeline_mode = #tpu.pipeline_mode<synchronous>, transform_indices = @transform_3, window_bounds = array<i64: 64, 64>}, {pipeline_mode = #tpu.pipeline_mode<synchronous>, transform_indices = @transform_4, window_bounds = array<i64: 6, 64>}, {transform_indices = @transform_5, window_bounds = array<i64: 1, 64, 64>}]} {
    %c0 = arith.constant 0 : index
    %c0_0 = arith.constant 0 : index
    %0 = vector.load %arg5[%c0, %c0_0] : memref<6x64xf32, #tpu.memory_space<vmem>>, vector<6x64xf32>
    %1 = vector.extract_strided_slice %0 {offsets = [0, 0], sizes = [1, 64], strides = [1, 1]} : vector<6x64xf32> to vector<1x64xf32>
    %2 = vector.extract_strided_slice %0 {offsets = [1, 0], sizes = [1, 64], strides = [1, 1]} : vector<6x64xf32> to vector<1x64xf32>
    %3 = vector.extract_strided_slice %0 {offsets = [2, 0], sizes = [1, 64], strides = [1, 1]} : vector<6x64xf32> to vector<1x64xf32>
    %4 = vector.extract_strided_slice %0 {offsets = [3, 0], sizes = [1, 64], strides = [1, 1]} : vector<6x64xf32> to vector<1x64xf32>
    %5 = vector.extract_strided_slice %0 {offsets = [4, 0], sizes = [1, 64], strides = [1, 1]} : vector<6x64xf32> to vector<1x64xf32>
    %6 = vector.extract_strided_slice %0 {offsets = [5, 0], sizes = [1, 64], strides = [1, 1]} : vector<6x64xf32> to vector<1x64xf32>
    %c0_1 = arith.constant 0 : index
    %c0_2 = arith.constant 0 : index
    %c0_3 = arith.constant 0 : index
    %7 = vector.load %arg1[%c0_1, %c0_2, %c0_3] : memref<1x256x32xf32, #tpu.memory_space<vmem>>, vector<1x256x32xf32>
    %8 = vector.shape_cast %7 : vector<1x256x32xf32> to vector<256x32xf32>
    %9 = arith.truncf %8 : vector<256x32xf32> to vector<256x32xbf16>
    %c0_4 = arith.constant 0 : index
    %c0_5 = arith.constant 0 : index
    %10 = vector.load %arg2[%c0_4, %c0_5] : memref<32x64xbf16, #tpu.memory_space<vmem>>, vector<32x64xbf16>
    %cst = arith.constant dense<0.000000e+00> : vector<256x64xf32>
    %11 = tpu.matmul %9, %10, %cst {dimension_numbers = #tpu.dot_dimension_numbers<[1], [0], [0], [1], [0, 0, 1, 1], [], []>} : vector<256x32xbf16>, vector<32x64xbf16>, vector<256x64xf32> -> vector<256x64xf32>
    %12 = vector.broadcast %1 : vector<1x64xf32> to vector<256x64xf32>
    %13 = arith.mulf %11, %12 : vector<256x64xf32>
    %14 = vector.broadcast %2 : vector<1x64xf32> to vector<256x64xf32>
    %15 = arith.addf %13, %14 : vector<256x64xf32>
    %cst_6 = arith.constant 0.000000e+00 : f32
    %16 = vector.broadcast %cst_6 : f32 to vector<256x64xf32>
    %17 = arith.cmpf oge, %15, %16 : vector<256x64xf32>
    %18 = vector.broadcast %3 : vector<1x64xf32> to vector<256x64xf32>
    %19 = arith.mulf %18, %15 : vector<256x64xf32>
    %20 = arith.select %17, %15, %19 : vector<256x64xi1>, vector<256x64xf32>
    %cst_7 = arith.constant 0.000000e+00 : f32
    %21 = vector.broadcast %cst_7 : f32 to vector<1x9x64xf32>
    %cst_8 = arith.constant 0.000000e+00 : f32
    %22 = vector.broadcast %cst_8 : f32 to vector<9x1x64xf32>
    %c0_9 = arith.constant 0 : index
    %c0_10 = arith.constant 0 : index
    %c0_11 = arith.constant 0 : index
    %c0_12 = arith.constant 0 : index
    %23 = vector.load %arg7[%c0_9, %c0_10, %c0_11, %c0_12] : memref<4x9x9x64xf32, #tpu.memory_space<vmem>>, vector<1x1x9x64xf32>
    %24 = vector.shape_cast %23 : vector<1x1x9x64xf32> to vector<1x9x64xf32>
    %25 = vector.shape_cast %21 : vector<1x9x64xf32> to vector<1x1x9x64xf32>
    tpu.vector_store %arg7[%c0_9, %c0_10, %c0_11, %c0_12], %25 {strides = array<i32>} : memref<4x9x9x64xf32, #tpu.memory_space<vmem>>, vector<1x1x9x64xf32>,
    %c1 = arith.constant 1 : index
    %c0_13 = arith.constant 0 : index
    %c0_14 = arith.constant 0 : index
    %c0_15 = arith.constant 0 : index
    %26 = vector.load %arg7[%c1, %c0_13, %c0_14, %c0_15] : memref<4x9x9x64xf32, #tpu.memory_space<vmem>>, vector<1x1x9x64xf32>
    %27 = vector.shape_cast %26 : vector<1x1x9x64xf32> to vector<1x9x64xf32>
    %28 = vector.shape_cast %21 : vector<1x9x64xf32> to vector<1x1x9x64xf32>
    tpu.vector_store %arg7[%c1, %c0_13, %c0_14, %c0_15], %28 {strides = array<i32>} : memref<4x9x9x64xf32, #tpu.memory_space<vmem>>, vector<1x1x9x64xf32>,
    %c0_16 = arith.constant 0 : index
    %c0_17 = arith.constant 0 : index
    %c0_18 = arith.constant 0 : index
    %c0_19 = arith.constant 0 : index
    %29 = vector.load %arg7[%c0_16, %c0_17, %c0_18, %c0_19] : memref<4x9x9x64xf32, #tpu.memory_space<vmem>>, vector<1x9x1x64xf32>
    %30 = vector.shape_cast %29 : vector<1x9x1x64xf32> to vector<9x1x64xf32>
    %31 = vector.shape_cast %22 : vector<9x1x64xf32> to vector<1x9x1x64xf32>
    tpu.vector_store %arg7[%c0_16, %c0_17, %c0_18, %c0_19], %31 {strides = array<i32>} : memref<4x9x9x64xf32, #tpu.memory_space<vmem>>, vector<1x9x1x64xf32>,
    %c2 = arith.constant 2 : index
    %c0_20 = arith.constant 0 : index
    %c0_21 = arith.constant 0 : index
    %c0_22 = arith.constant 0 : index
    %32 = vector.load %arg7[%c2, %c0_20, %c0_21, %c0_22] : memref<4x9x9x64xf32, #tpu.memory_space<vmem>>, vector<1x9x1x64xf32>
    %33 = vector.shape_cast %32 : vector<1x9x1x64xf32> to vector<9x1x64xf32>
    %34 = vector.shape_cast %22 : vector<9x1x64xf32> to vector<1x9x1x64xf32>
    tpu.vector_store %arg7[%c2, %c0_20, %c0_21, %c0_22], %34 {strides = array<i32>} : memref<4x9x9x64xf32, #tpu.memory_space<vmem>>, vector<1x9x1x64xf32>,
    %35 = vector.extract_strided_slice %20 {offsets = [0, 0], sizes = [64, 64], strides = [1, 1]} : vector<256x64xf32> to vector<64x64xf32>
    %36 = vector.shape_cast %35 : vector<64x64xf32> to vector<8x8x64xf32>
    %37 = vector.extract_strided_slice %20 {offsets = [64, 0], sizes = [64, 64], strides = [1, 1]} : vector<256x64xf32> to vector<64x64xf32>
    %38 = vector.shape_cast %37 : vector<64x64xf32> to vector<8x8x64xf32>
    %39 = vector.extract_strided_slice %20 {offsets = [128, 0], sizes = [64, 64], strides = [1, 1]} : vector<256x64xf32> to vector<64x64xf32>
    %40 = vector.shape_cast %39 : vector<64x64xf32> to vector<8x8x64xf32>
    %41 = vector.extract_strided_slice %20 {offsets = [192, 0], sizes = [64, 64], strides = [1, 1]} : vector<256x64xf32> to vector<64x64xf32>
    %42 = vector.shape_cast %41 : vector<64x64xf32> to vector<8x8x64xf32>
    %c3 = arith.constant 3 : index
    %c0_23 = arith.constant 0 : index
    %c0_24 = arith.constant 0 : index
    %c0_25 = arith.constant 0 : index
    %43 = vector.load %arg7[%c3, %c0_23, %c0_24, %c0_25] : memref<4x9x9x64xf32, #tpu.memory_space<vmem>>, vector<1x8x8x64xf32>
    %44 = vector.shape_cast %43 : vector<1x8x8x64xf32> to vector<8x8x64xf32>
    %45 = vector.shape_cast %36 : vector<8x8x64xf32> to vector<1x8x8x64xf32>
    tpu.vector_store %arg7[%c3, %c0_23, %c0_24, %c0_25], %45 {strides = array<i32>} : memref<4x9x9x64xf32, #tpu.memory_space<vmem>>, vector<1x8x8x64xf32>,
    %c2_26 = arith.constant 2 : index
    %c0_27 = arith.constant 0 : index
    %c1_28 = arith.constant 1 : index
    %c0_29 = arith.constant 0 : index
    %46 = vector.load %arg7[%c2_26, %c0_27, %c1_28, %c0_29] : memref<4x9x9x64xf32, #tpu.memory_space<vmem>>, vector<1x8x8x64xf32>
    %47 = vector.shape_cast %46 : vector<1x8x8x64xf32> to vector<8x8x64xf32>
    %48 = vector.shape_cast %38 : vector<8x8x64xf32> to vector<1x8x8x64xf32>
    tpu.vector_store %arg7[%c2_26, %c0_27, %c1_28, %c0_29], %48 {strides = array<i32>} : memref<4x9x9x64xf32, #tpu.memory_space<vmem>>, vector<1x8x8x64xf32>,
    %c1_30 = arith.constant 1 : index
    %c1_31 = arith.constant 1 : index
    %c0_32 = arith.constant 0 : index
    %c0_33 = arith.constant 0 : index
    %49 = vector.load %arg7[%c1_30, %c1_31, %c0_32, %c0_33] : memref<4x9x9x64xf32, #tpu.memory_space<vmem>>, vector<1x8x8x64xf32>
    %50 = vector.shape_cast %49 : vector<1x8x8x64xf32> to vector<8x8x64xf32>
    %51 = vector.shape_cast %40 : vector<8x8x64xf32> to vector<1x8x8x64xf32>
    tpu.vector_store %arg7[%c1_30, %c1_31, %c0_32, %c0_33], %51 {strides = array<i32>} : memref<4x9x9x64xf32, #tpu.memory_space<vmem>>, vector<1x8x8x64xf32>,
    %c0_34 = arith.constant 0 : index
    %c1_35 = arith.constant 1 : index
    %c1_36 = arith.constant 1 : index
    %c0_37 = arith.constant 0 : index
    %52 = vector.load %arg7[%c0_34, %c1_35, %c1_36, %c0_37] : memref<4x9x9x64xf32, #tpu.memory_space<vmem>>, vector<1x8x8x64xf32>
    %53 = vector.shape_cast %52 : vector<1x8x8x64xf32> to vector<8x8x64xf32>
    %54 = vector.shape_cast %42 : vector<8x8x64xf32> to vector<1x8x8x64xf32>
    tpu.vector_store %arg7[%c0_34, %c1_35, %c1_36, %c0_37], %54 {strides = array<i32>} : memref<4x9x9x64xf32, #tpu.memory_space<vmem>>, vector<1x8x8x64xf32>,
    %c0_38 = arith.constant 0 : index
    %c0_39 = arith.constant 0 : index
    %55 = vector.load %arg3[%c0_38, %c0_39] : memref<9x64xf32, #tpu.memory_space<vmem>>, vector<9x64xf32>
    %56 = vector.extract_strided_slice %55 {offsets = [0, 0], sizes = [1, 64], strides = [1, 1]} : vector<9x64xf32> to vector<1x64xf32>
    %57 = vector.shape_cast %56 : vector<1x64xf32> to vector<1x1x64xf32>
    %c0_40 = arith.constant 0 : index
    %c0_41 = arith.constant 0 : index
    %c0_42 = arith.constant 0 : index
    %c0_43 = arith.constant 0 : index
    %58 = vector.load %arg7[%c0_40, %c0_41, %c0_42, %c0_43] : memref<4x9x9x64xf32, #tpu.memory_space<vmem>>, vector<1x8x8x64xf32>
    %59 = vector.shape_cast %58 : vector<1x8x8x64xf32> to vector<8x8x64xf32>
    %60 = vector.broadcast %57 : vector<1x1x64xf32> to vector<8x8x64xf32>
    %61 = arith.mulf %60, %59 : vector<8x8x64xf32>
    %62 = vector.extract_strided_slice %55 {offsets = [1, 0], sizes = [1, 64], strides = [1, 1]} : vector<9x64xf32> to vector<1x64xf32>
    %63 = vector.shape_cast %62 : vector<1x64xf32> to vector<1x1x64xf32>
    %c1_44 = arith.constant 1 : index
    %c0_45 = arith.constant 0 : index
    %c0_46 = arith.constant 0 : index
    %c0_47 = arith.constant 0 : index
    %64 = vector.load %arg7[%c1_44, %c0_45, %c0_46, %c0_47] : memref<4x9x9x64xf32, #tpu.memory_space<vmem>>, vector<1x8x8x64xf32>
    %65 = vector.shape_cast %64 : vector<1x8x8x64xf32> to vector<8x8x64xf32>
    %66 = vector.broadcast %63 : vector<1x1x64xf32> to vector<8x8x64xf32>
    %67 = arith.mulf %66, %65 : vector<8x8x64xf32>
    %68 = arith.addf %61, %67 : vector<8x8x64xf32>
    %69 = vector.extract_strided_slice %55 {offsets = [2, 0], sizes = [1, 64], strides = [1, 1]} : vector<9x64xf32> to vector<1x64xf32>
    %70 = vector.shape_cast %69 : vector<1x64xf32> to vector<1x1x64xf32>
    %c0_48 = arith.constant 0 : index
    %c0_49 = arith.constant 0 : index
    %c1_50 = arith.constant 1 : index
    %c0_51 = arith.constant 0 : index
    %71 = vector.load %arg7[%c0_48, %c0_49, %c1_50, %c0_51] : memref<4x9x9x64xf32, #tpu.memory_space<vmem>>, vector<1x8x8x64xf32>
    %72 = vector.shape_cast %71 : vector<1x8x8x64xf32> to vector<8x8x64xf32>
    %73 = vector.broadcast %70 : vector<1x1x64xf32> to vector<8x8x64xf32>
    %74 = arith.mulf %73, %72 : vector<8x8x64xf32>
    %75 = arith.addf %68, %74 : vector<8x8x64xf32>
    %76 = vector.extract_strided_slice %55 {offsets = [3, 0], sizes = [1, 64], strides = [1, 1]} : vector<9x64xf32> to vector<1x64xf32>
    %77 = vector.shape_cast %76 : vector<1x64xf32> to vector<1x1x64xf32>
    %c2_52 = arith.constant 2 : index
    %c0_53 = arith.constant 0 : index
    %c0_54 = arith.constant 0 : index
    %c0_55 = arith.constant 0 : index
    %78 = vector.load %arg7[%c2_52, %c0_53, %c0_54, %c0_55] : memref<4x9x9x64xf32, #tpu.memory_space<vmem>>, vector<1x8x8x64xf32>
    %79 = vector.shape_cast %78 : vector<1x8x8x64xf32> to vector<8x8x64xf32>
    %80 = vector.broadcast %77 : vector<1x1x64xf32> to vector<8x8x64xf32>
    %81 = arith.mulf %80, %79 : vector<8x8x64xf32>
    %82 = arith.addf %75, %81 : vector<8x8x64xf32>
    %83 = vector.extract_strided_slice %55 {offsets = [4, 0], sizes = [1, 64], strides = [1, 1]} : vector<9x64xf32> to vector<1x64xf32>
    %84 = vector.shape_cast %83 : vector<1x64xf32> to vector<1x1x64xf32>
    %c3_56 = arith.constant 3 : index
    %c0_57 = arith.constant 0 : index
    %c0_58 = arith.constant 0 : index
    %c0_59 = arith.constant 0 : index
    %85 = vector.load %arg7[%c3_56, %c0_57, %c0_58, %c0_59] : memref<4x9x9x64xf32, #tpu.memory_space<vmem>>, vector<1x8x8x64xf32>
    %86 = vector.shape_cast %85 : vector<1x8x8x64xf32> to vector<8x8x64xf32>
    %87 = vector.broadcast %84 : vector<1x1x64xf32> to vector<8x8x64xf32>
    %88 = arith.mulf %87, %86 : vector<8x8x64xf32>
    %89 = arith.addf %82, %88 : vector<8x8x64xf32>
    %90 = vector.extract_strided_slice %55 {offsets = [5, 0], sizes = [1, 64], strides = [1, 1]} : vector<9x64xf32> to vector<1x64xf32>
    %91 = vector.shape_cast %90 : vector<1x64xf32> to vector<1x1x64xf32>
    %c2_60 = arith.constant 2 : index
    %c0_61 = arith.constant 0 : index
    %c1_62 = arith.constant 1 : index
    %c0_63 = arith.constant 0 : index
    %92 = vector.load %arg7[%c2_60, %c0_61, %c1_62, %c0_63] : memref<4x9x9x64xf32, #tpu.memory_space<vmem>>, vector<1x8x8x64xf32>
    %93 = vector.shape_cast %92 : vector<1x8x8x64xf32> to vector<8x8x64xf32>
    %94 = vector.broadcast %91 : vector<1x1x64xf32> to vector<8x8x64xf32>
    %95 = arith.mulf %94, %93 : vector<8x8x64xf32>
    %96 = arith.addf %89, %95 : vector<8x8x64xf32>
    %97 = vector.extract_strided_slice %55 {offsets = [6, 0], sizes = [1, 64], strides = [1, 1]} : vector<9x64xf32> to vector<1x64xf32>
    %98 = vector.shape_cast %97 : vector<1x64xf32> to vector<1x1x64xf32>
    %c0_64 = arith.constant 0 : index
    %c1_65 = arith.constant 1 : index
    %c0_66 = arith.constant 0 : index
    %c0_67 = arith.constant 0 : index
    %99 = vector.load %arg7[%c0_64, %c1_65, %c0_66, %c0_67] : memref<4x9x9x64xf32, #tpu.memory_space<vmem>>, vector<1x8x8x64xf32>
    %100 = vector.shape_cast %99 : vector<1x8x8x64xf32> to vector<8x8x64xf32>
    %101 = vector.broadcast %98 : vector<1x1x64xf32> to vector<8x8x64xf32>
    %102 = arith.mulf %101, %100 : vector<8x8x64xf32>
    %103 = arith.addf %96, %102 : vector<8x8x64xf32>
    %104 = vector.extract_strided_slice %55 {offsets = [7, 0], sizes = [1, 64], strides = [1, 1]} : vector<9x64xf32> to vector<1x64xf32>
    %105 = vector.shape_cast %104 : vector<1x64xf32> to vector<1x1x64xf32>
    %c1_68 = arith.constant 1 : index
    %c1_69 = arith.constant 1 : index
    %c0_70 = arith.constant 0 : index
    %c0_71 = arith.constant 0 : index
    %106 = vector.load %arg7[%c1_68, %c1_69, %c0_70, %c0_71] : memref<4x9x9x64xf32, #tpu.memory_space<vmem>>, vector<1x8x8x64xf32>
    %107 = vector.shape_cast %106 : vector<1x8x8x64xf32> to vector<8x8x64xf32>
    %108 = vector.broadcast %105 : vector<1x1x64xf32> to vector<8x8x64xf32>
    %109 = arith.mulf %108, %107 : vector<8x8x64xf32>
    %110 = arith.addf %103, %109 : vector<8x8x64xf32>
    %111 = vector.extract_strided_slice %55 {offsets = [8, 0], sizes = [1, 64], strides = [1, 1]} : vector<9x64xf32> to vector<1x64xf32>
    %112 = vector.shape_cast %111 : vector<1x64xf32> to vector<1x1x64xf32>
    %c0_72 = arith.constant 0 : index
    %c1_73 = arith.constant 1 : index
    %c1_74 = arith.constant 1 : index
    %c0_75 = arith.constant 0 : index
    %113 = vector.load %arg7[%c0_72, %c1_73, %c1_74, %c0_75] : memref<4x9x9x64xf32, #tpu.memory_space<vmem>>, vector<1x8x8x64xf32>
    %114 = vector.shape_cast %113 : vector<1x8x8x64xf32> to vector<8x8x64xf32>
    %115 = vector.broadcast %112 : vector<1x1x64xf32> to vector<8x8x64xf32>
    %116 = arith.mulf %115, %114 : vector<8x8x64xf32>
    %117 = arith.addf %110, %116 : vector<8x8x64xf32>
    %118 = vector.shape_cast %117 : vector<8x8x64xf32> to vector<64x64xf32>
    %119 = vector.broadcast %4 : vector<1x64xf32> to vector<64x64xf32>
    %120 = arith.mulf %118, %119 : vector<64x64xf32>
    %121 = vector.broadcast %5 : vector<1x64xf32> to vector<64x64xf32>
    %122 = arith.addf %120, %121 : vector<64x64xf32>
    %cst_76 = arith.constant 0.000000e+00 : f32
    %123 = vector.broadcast %cst_76 : f32 to vector<64x64xf32>
    %124 = arith.cmpf oge, %122, %123 : vector<64x64xf32>
    %125 = vector.broadcast %6 : vector<1x64xf32> to vector<64x64xf32>
    %126 = arith.mulf %125, %122 : vector<64x64xf32>
    %127 = arith.select %124, %122, %126 : vector<64x64xi1>, vector<64x64xf32>
    %128 = arith.truncf %127 : vector<64x64xf32> to vector<64x64xbf16>
    %c0_77 = arith.constant 0 : index
    %c0_78 = arith.constant 0 : index
    %129 = vector.load %arg4[%c0_77, %c0_78] : memref<64x64xbf16, #tpu.memory_space<vmem>>, vector<64x64xbf16>
    %cst_79 = arith.constant dense<0.000000e+00> : vector<64x64xf32>
    %130 = tpu.matmul %128, %129, %cst_79 {dimension_numbers = #tpu.dot_dimension_numbers<[1], [0], [0], [1], [0, 0, 1, 1], [], []>} : vector<64x64xbf16>, vector<64x64xbf16>, vector<64x64xf32> -> vector<64x64xf32>
    %c0_80 = arith.constant 0 : index
    %c0_81 = arith.constant 0 : index
    %c0_82 = arith.constant 0 : index
    %131 = vector.load %arg6[%c0_80, %c0_81, %c0_82] : memref<1x64x64xf32, #tpu.memory_space<vmem>>, vector<1x64x64xf32>
    %132 = vector.shape_cast %131 : vector<1x64x64xf32> to vector<64x64xf32>
    %133 = vector.shape_cast %130 : vector<64x64xf32> to vector<1x64x64xf32>
    tpu.vector_store %arg6[%c0_80, %c0_81, %c0_82], %133 {strides = array<i32>} : memref<1x64x64xf32, #tpu.memory_space<vmem>>, vector<1x64x64xf32>,
    return
  }
  func.func @transform_0(%arg0: i32) -> (i32, i32, i32) {
    %c0_i32 = arith.constant 0 : i32
    %c0_i32_0 = arith.constant 0 : i32
    %c0_i32_1 = arith.constant 0 : i32
    return %arg0, %c0_i32, %c0_i32_0 : i32, i32, i32
  }
  func.func @transform_1(%arg0: i32) -> (i32, i32) {
    %c0_i32 = arith.constant 0 : i32
    %c0_i32_0 = arith.constant 0 : i32
    %c0_i32_1 = arith.constant 0 : i32
    return %c0_i32, %c0_i32_0 : i32, i32
  }
  func.func @transform_2(%arg0: i32) -> (i32, i32) {
    %c0_i32 = arith.constant 0 : i32
    %c0_i32_0 = arith.constant 0 : i32
    %c0_i32_1 = arith.constant 0 : i32
    return %c0_i32, %c0_i32_0 : i32, i32
  }
  func.func @transform_3(%arg0: i32) -> (i32, i32) {
    %c0_i32 = arith.constant 0 : i32
    %c0_i32_0 = arith.constant 0 : i32
    %c0_i32_1 = arith.constant 0 : i32
    return %c0_i32, %c0_i32_0 : i32, i32
  }
  func.func @transform_4(%arg0: i32) -> (i32, i32) {
    %c0_i32 = arith.constant 0 : i32
    %c0_i32_0 = arith.constant 0 : i32
    %c0_i32_1 = arith.constant 0 : i32
    return %c0_i32, %c0_i32_0 : i32, i32
  }
  func.func @transform_5(%arg0: i32) -> (i32, i32, i32) {
    %c0_i32 = arith.constant 0 : i32
    %c0_i32_0 = arith.constant 0 : i32
    %c0_i32_1 = arith.constant 0 : i32
    return %arg0, %c0_i32, %c0_i32_0 : i32, i32, i32
  }
}

</mosaic_0001>

<llo_original>
// kernel: tile.14
$region0: #{tile.14}
  %s0 = inlined_call_operand.vmem [shape: f32[6,2,32], index: 0, kind: input, shape index: {}]
  %s1 = inlined_call_operand.vmem [shape: f32[6,64], index: 1, kind: output, shape index: {}]
  $region1: #{tile.14} parent=0
    #allocation0 [shape = 'u8[24576]{0}', space=vmem, size = 0x6000, scoped, tag = 'scoped mem for input reshape']
    %s3 = sshllo.u32 0, 2
    %s4 = smul.addr 2, 5
    %s5 = scalar_lea.vmem %s0, %s4
    %v6 = vld [vmem:[%s5] sm:%s3]
    %s7 = scalar_lea.vmem [#allocation0], 40
    %8 = vst [vmem:[%s7] sm:%s3] %v6
    %s9 = smul.addr 2, 4
    %s10 = scalar_lea.vmem %s0, %s9
    %v11 = vld [vmem:[%s10] sm:%s3]
    %s12 = scalar_lea.vmem [#allocation0], 32
    %13 = vst [vmem:[%s12] sm:%s3] %v11
    %s14 = smul.addr 2, 3
    %s15 = scalar_lea.vmem %s0, %s14
    %v16 = vld [vmem:[%s15] sm:%s3]
    %s17 = scalar_lea.vmem [#allocation0], 24
    %18 = vst [vmem:[%s17] sm:%s3] %v16
    %s19 = smul.addr 2, 2
    %s20 = scalar_lea.vmem %s0, %s19
    %v21 = vld [vmem:[%s20] sm:%s3]
    %s22 = scalar_lea.vmem [#allocation0], 16
    %23 = vst [vmem:[%s22] sm:%s3] %v21
    %s24 = scalar_lea.vmem %s0, 2
    %v25 = vld [vmem:[%s24] sm:%s3]
    %s26 = scalar_lea.vmem [#allocation0], 8
    %27 = vst [vmem:[%s26] sm:%s3] %v25
    %v28 = vld [vmem:[%s0] sm:%s3]
    %29 = vst [vmem:[#allocation0] sm:%s3] %v28
    %v30 = vld [vmem:[#allocation0] ss:$8 sm:$0xf]
    %s31 = smov 48
    %v32 = vld [vmem:[#allocation0] ss:$8 sm:%s31]
    %vm33 = vcmask 1045508
    %v34 = vsel %vm33, %v32, %v30
    %vm35 = vcmask 261120
    %36 = vst.msk [vmem:[%s1] sm:$0x3f] %vm35, %v34
    %s37 = scalar_lea.vmem [#allocation0], 1
    %v38 = vld [vmem:[%s37] ss:$8 sm:$0xf]
    %s39 = scalar_lea.vmem [#allocation0], 1
    %s40 = smov 48
    %v41 = vld [vmem:[%s39] ss:$8 sm:%s40]
    %vm42 = vcmask 1045508
    %v43 = vsel %vm42, %v41, %v38
    %44 = vrot.lane.b32.xlu0 %v43, 32
    %v45 = vpop.permute.xlu0 %44
    %vm46 = vcmask 523520
    %47 = vst.msk [vmem:[%s1] sm:$0x3f] %vm46, %v45

// kernel: tile.19
$region0: #{tile.19}
  %s0 = inlined_call_operand.vmem [shape: f32[9,2,32], index: 0, kind: input, shape index: {}]
  %s1 = inlined_call_operand.vmem [shape: f32[9,64], index: 1, kind: output, shape index: {}]
  $region1: #{tile.19} parent=0
    #allocation0 [shape = 'u8[36864]{0}', space=vmem, size = 0x9000, scoped, tag = 'scoped mem for input reshape']
    %s3 = sshllo.u32 0, 2
    %s4 = smul.addr 2, 8
    %s5 = scalar_lea.vmem %s0, %s4
    %v6 = vld [vmem:[%s5] sm:%s3]
    %s7 = scalar_lea.vmem [#allocation0], 64
    %8 = vst [vmem:[%s7] sm:%s3] %v6
    %s9 = smul.addr 2, 7
    %s10 = scalar_lea.vmem %s0, %s9
    %v11 = vld [vmem:[%s10] sm:%s3]
    %s12 = scalar_lea.vmem [#allocation0], 56
    %13 = vst [vmem:[%s12] sm:%s3] %v11
    %s14 = smul.addr 2, 6
    %s15 = scalar_lea.vmem %s0, %s14
    %v16 = vld [vmem:[%s15] sm:%s3]
    %s17 = scalar_lea.vmem [#allocation0], 48
    %18 = vst [vmem:[%s17] sm:%s3] %v16
    %s19 = smul.addr 2, 5
    %s20 = scalar_lea.vmem %s0, %s19
    %v21 = vld [vmem:[%s20] sm:%s3]
    %s22 = scalar_lea.vmem [#allocation0], 40
    %23 = vst [vmem:[%s22] sm:%s3] %v21
    %s24 = smul.addr 2, 4
    %s25 = scalar_lea.vmem %s0, %s24
    %v26 = vld [vmem:[%s25] sm:%s3]
    %s27 = scalar_lea.vmem [#allocation0], 32
    %28 = vst [vmem:[%s27] sm:%s3] %v26
    %s29 = smul.addr 2, 3
    %s30 = scalar_lea.vmem %s0, %s29
    %v31 = vld [vmem:[%s30] sm:%s3]
    %s32 = scalar_lea.vmem [#allocation0], 24
    %33 = vst [vmem:[%s32] sm:%s3] %v31
    %s34 = smul.addr 2, 2
    %s35 = scalar_lea.vmem %s0, %s34
    %v36 = vld [vmem:[%s35] sm:%s3]
    %s37 = scalar_lea.vmem [#allocation0], 16
    %38 = vst [vmem:[%s37] sm:%s3] %v36
    %s39 = scalar_lea.vmem %s0, 2
    %v40 = vld [vmem:[%s39] sm:%s3]
    %s41 = scalar_lea.vmem [#allocation0], 8
    %42 = vst [vmem:[%s41] sm:%s3] %v40
    %v43 = vld [vmem:[%s0] sm:%s3]
    %44 = vst [vmem:[#allocation0] sm:%s3] %v43
    %v45 = vld [vmem:[#allocation0] ss:$8 sm:$0xf]
    %v46 = vld [vmem:[#allocation0] ss:$8 sm:$0xf0]
    %vm47 = vcmask 1047556
    %v48 = vsel %vm47, %v46, %v45
    %vm49 = vcmask 261120
    %50 = vst.msk [vmem:[%s1] sm:$0xff] %vm49, %v48
    %s51 = scalar_lea.vmem [#allocation0], 64
    %v52 = vld [vmem:[%s51] sm:$0x1]
    %vm53 = vcmask 261120
    %s54 = scalar_lea.vmem %s1, 8
    %55 = vst.msk [vmem:[%s54] sm:$0x1] %vm53, %v52
    %s56 = scalar_lea.vmem [#allocation0], 1
    %v57 = vld [vmem:[%s56] ss:$8 sm:$0xf]
    %s58 = scalar_lea.vmem [#allocation0], 1
    %v59 = vld [vmem:[%s58] ss:$8 sm:$0xf0]
    %vm60 = vcmask 1047556
    %v61 = vsel %vm60, %v59, %v57
    %62 = vrot.lane.b32.xlu0 %v61, 32
    %v63 = vpop.permute.xlu0 %62
    %vm64 = vcmask 523520
    %65 = vst.msk [vmem:[%s1] sm:$0xff] %vm64, %v63
    %s66 = scalar_lea.vmem [#allocation0], 65
    %v67 = vld [vmem:[%s66] sm:$0x1]
    %68 = vrot.lane.b32.xlu0 %v67, 32
    %v69 = vpop.permute.xlu0 %68
    %vm70 = vcmask 523520
    %s71 = scalar_lea.vmem %s1, 8
    %72 = vst.msk [vmem:[%s71] sm:$0x1] %vm70, %v69

// kernel: depth_wise_forward.1
$region0: #{depth_wise_forward.1}
  #allocation0 [shape = 'u32[]', space=smem, size = 0x4, offset = 0x4, fixed_abs, tag = 'smem constant byte address 0x4 - core index']
  #allocation1 [shape = 'u32[144,128]{1,0:T(1,128)}', space=vmem, size = 0x12000, scoped, tag = 'internal scratch']
  #allocation2 [shape = 'f32[4,9,9,64]{3,2,1,0:T(8,128)}', space=vmem, size = 0x48000, scoped, tag = 'scratch operand']
  %s0 = inlined_call_operand.vmem [shape: f32[1,256,32], index: 0, kind: input, shape index: {}]
  %s1 = inlined_call_operand.vmem [shape: bf16[32,64], index: 1, kind: input, shape index: {}]
  %s2 = inlined_call_operand.vmem [shape: f32[9,64], index: 2, kind: input, shape index: {}]
  %s3 = inlined_call_operand.vmem [shape: bf16[64,64], index: 3, kind: input, shape index: {}]
  %s4 = inlined_call_operand.vmem [shape: f32[6,64], index: 4, kind: input, shape index: {}]
  %s5 = inlined_call_operand.vmem [shape: f32[1,64,64], index: 5, kind: output, shape index: {}]
  %s6 = sld [smem:[#allocation0]]
  $region30: #{depth_wise_forward.1} parent=0
    _
  %s8 = ssub.s32 1, %s6
  %s9 = scalar_select 0, %s8, %s6
  // Predicated region
  $region2: #{depth_wise_forward.1} parent=0 // pred_check
    _
  $region3: #{depth_wise_forward.1} parent=0 // pred_check_branch
    %11 = sbr.rel (0) target = $region5
  $region4: #{depth_wise_forward.1} parent=0 // pred_region
    _
  $region5: #{depth_wise_forward.1} parent=0 // pred_fallthru
    _
  // Predicated region
  $region6: #{depth_wise_forward.1} parent=0 // pred_check
    _
  $region7: #{depth_wise_forward.1} parent=0 // pred_check_branch
    %13 = sbr.rel (0) target = $region9
  $region8: #{depth_wise_forward.1} parent=0 // pred_region
    _
  $region9: #{depth_wise_forward.1} parent=0 // pred_fallthru
    _
  // Predicated region
  $region10: #{depth_wise_forward.1} parent=0 // pred_check
    _
  $region11: #{depth_wise_forward.1} parent=0 // pred_check_branch
    %15 = sbr.rel (0) target = $region13
  $region12: #{depth_wise_forward.1} parent=0 // pred_region
    _
  $region13: #{depth_wise_forward.1} parent=0 // pred_fallthru
    _
  // Predicated region
  $region14: #{depth_wise_forward.1} parent=0 // pred_check
    _
  $region15: #{depth_wise_forward.1} parent=0 // pred_check_branch
    %17 = sbr.rel (0) target = $region17
  $region16: #{depth_wise_forward.1} parent=0 // pred_region
    _
  $region17: #{depth_wise_forward.1} parent=0 // pred_fallthru
    _
  // Predicated region
  $region18: #{depth_wise_forward.1} parent=0 // pred_check
    _
  $region19: #{depth_wise_forward.1} parent=0 // pred_check_branch
    %19 = sbr.rel (0) target = $region21
  $region20: #{depth_wise_forward.1} parent=0 // pred_region
    _
  $region21: #{depth_wise_forward.1} parent=0 // pred_fallthru
    _
  %v21 = vld [vmem:[%s4] sm:$0x3f]
  %v22 = vld [vmem:[%s0] sm:$0xff]
  %v23 = vld [vmem:[%s0 + $0x8] sm:$0xff]
  %v24 = vld [vmem:[%s0 + $0x10] sm:$0xff]
  %v25 = vld [vmem:[%s0 + $0x18] sm:$0xff]
  %v26 = vld [vmem:[%s0 + $0x20] sm:$0xff]
  %v27 = vld [vmem:[%s0 + $0x28] sm:$0xff]
  %v28 = vld [vmem:[%s0 + $0x30] sm:$0xff]
  %v29 = vld [vmem:[%s0 + $0x38] sm:$0xff]
  %v30 = vld [vmem:[%s0 + $0x40] sm:$0xff]
  %v31 = vld [vmem:[%s0 + $0x48] sm:$0xff]
  %v32 = vld [vmem:[%s0 + $0x50] sm:$0xff]
  %v33 = vld [vmem:[%s0 + $0x58] sm:$0xff]
  %v34 = vld [vmem:[%s0 + $0x60] sm:$0xff]
  %v35 = vld [vmem:[%s0 + $0x68] sm:$0xff]
  %v36 = vld [vmem:[%s0 + $0x70] sm:$0xff]
  %v37 = vld [vmem:[%s0 + $0x78] sm:$0xff]
  %v38 = vld [vmem:[%s0 + $0x80] sm:$0xff]
  %v39 = vld [vmem:[%s0 + $0x88] sm:$0xff]
  %v40 = vld [vmem:[%s0 + $0x90] sm:$0xff]
  %v41 = vld [vmem:[%s0 + $0x98] sm:$0xff]
  %v42 = vld [vmem:[%s0 + $0xa0] sm:$0xff]
  %v43 = vld [vmem:[%s0 + $0xa8] sm:$0xff]
  %v44 = vld [vmem:[%s0 + $0xb0] sm:$0xff]
  %v45 = vld [vmem:[%s0 + $0xb8] sm:$0xff]
  %v46 = vld [vmem:[%s0 + $0xc0] sm:$0xff]
  %v47 = vld [vmem:[%s0 + $0xc8] sm:$0xff]
  %v48 = vld [vmem:[%s0 + $0xd0] sm:$0xff]
  %v49 = vld [vmem:[%s0 + $0xd8] sm:$0xff]
  %v50 = vld [vmem:[%s0 + $0xe0] sm:$0xff]
  %v51 = vld [vmem:[%s0 + $0xe8] sm:$0xff]
  %v52 = vld [vmem:[%s0 + $0xf0] sm:$0xff]
  %v53 = vld [vmem:[%s0 + $0xf8] sm:$0xff]
  %v54 = vpack.c.bf16 %v23, %v22
  %v55 = vpack.c.bf16 %v25, %v24
  %v56 = vpack.c.bf16 %v27, %v26
  %v57 = vpack.c.bf16 %v29, %v28
  %v58 = vpack.c.bf16 %v31, %v30
  %v59 = vpack.c.bf16 %v33, %v32
  %v60 = vpack.c.bf16 %v35, %v34
  %v61 = vpack.c.bf16 %v37, %v36
  %v62 = vpack.c.bf16 %v39, %v38
  %v63 = vpack.c.bf16 %v41, %v40
  %v64 = vpack.c.bf16 %v43, %v42
  %v65 = vpack.c.bf16 %v45, %v44
  %v66 = vpack.c.bf16 %v47, %v46
  %v67 = vpack.c.bf16 %v49, %v48
  %v68 = vpack.c.bf16 %v51, %v50
  %v69 = vpack.c.bf16 %v53, %v52
  %v70 = vld [vmem:[%s1] sm:$0xf]
  %v71 = vld [vmem:[%s1 + $0x4] sm:$0xf]
  %v72 = vld [vmem:[%s1 + $0x8] sm:$0xf]
  %v73 = vld [vmem:[%s1 + $0xc] sm:$0xf]
  %v78 = vunpack.c.l.b16 %v70
  %v79 = vunpack.c.l.b16 %v71
  %v80 = vunpack.c.l.b16 %v72
  %v81 = vunpack.c.l.b16 %v73
  %v82 = vpack.c.b16 %v79, %v78
  %v83 = vpack.c.b16 %v81, %v80
  %vm86 = vcmask 261120
  %v88 = vsel %vm86, %v54, 0
  %v91 = vsel %vm86, %v55, 0
  %v94 = vsel %vm86, %v56, 0
  %v97 = vsel %vm86, %v57, 0
  %v100 = vsel %vm86, %v58, 0
  %v103 = vsel %vm86, %v59, 0
  %v106 = vsel %vm86, %v60, 0
  %v109 = vsel %vm86, %v61, 0
  %v112 = vsel %vm86, %v62, 0
  %v115 = vsel %vm86, %v63, 0
  %v118 = vsel %vm86, %v64, 0
  %v121 = vsel %vm86, %v65, 0
  %v124 = vsel %vm86, %v66, 0
  %v127 = vsel %vm86, %v67, 0
  %v130 = vsel %vm86, %v68, 0
  %v133 = vsel %vm86, %v69, 0
  %135 = vmatprep.subr.bf16.mxu0 0
  %136 = vmatpush1.bf16.msra.mxu0 %v82
  %137 = vmatprep.subr.bf16.mxu0 0
  %138 = vmatpush1.bf16.msra.mxu0 %v83
  %139 = vmatprep.subr.bf16.mxu0 0
  %140 = vmatpush1.bf16.msra.mxu0 0
  %141 = vmatprep.subr.bf16.mxu0 0
  %142 = vmatpush1.bf16.msra.mxu0 0
  %143 = vmatprep.subr.bf16.mxu0 0
  %144 = vmatpush1.bf16.msra.mxu0 0
  %145 = vmatprep.subr.bf16.mxu0 0
  %146 = vmatpush1.bf16.msra.mxu0 0
  %147 = vmatprep.subr.bf16.mxu0 0
  %148 = vmatpush1.bf16.msra.mxu0 0
  %149 = vmatprep.subr.bf16.mxu0 0
  %150 = vmatpush1.bf16.msra.mxu0 0
  %151 = vmatprep.subr.bf16.mxu0 0
  %152 = vmatpush1.bf16.msra.mxu0 0
  %153 = vmatprep.subr.bf16.mxu0 0
  %154 = vmatpush1.bf16.msra.mxu0 0
  %155 = vmatprep.subr.bf16.mxu0 0
  %156 = vmatpush1.bf16.msra.mxu0 0
  %157 = vmatprep.subr.bf16.mxu0 0
  %158 = vmatpush1.bf16.msra.mxu0 0
  %159 = vmatprep.subr.bf16.mxu0 0
  %160 = vmatpush1.bf16.msra.mxu0 0
  %161 = vmatprep.subr.bf16.mxu0 0
  %162 = vmatpush1.bf16.msra.mxu0 0
  %163 = vmatprep.subr.bf16.mxu0 0
  %164 = vmatpush1.bf16.msra.mxu0 0
  %165 = vmatprep.subr.bf16.mxu0 0
  %166 = vmatpush1.bf16.msra.mxu0 0
  %167 = vmatprep.mubr.bf16.mxu0 0
  %168 = vmatmul.mubr.bf16.gmra.mrb[0].mxu0 %v88
  %v169 = vpop.f32.mrb[0].mxu0
  %v170 = vadd.f32 0.0, %v169
  %v171 = vpop.f32.mrb[0].mxu0
  %v172 = vpop.f32.mrb[0].mxu0
  %v173 = vadd.f32 0.0, %v172
  %v174 = vpop.f32.mrb[0].mxu0
  %175 = vmatprep.mubr.bf16.mxu0 0
  %176 = vmatmul.mubr.bf16.gmra.mrb[0].mxu0 %v91
  %v177 = vpop.f32.mrb[0].mxu0
  %v178 = vadd.f32 0.0, %v177
  %v179 = vpop.f32.mrb[0].mxu0
  %v180 = vpop.f32.mrb[0].mxu0
  %v181 = vadd.f32 0.0, %v180
  %v182 = vpop.f32.mrb[0].mxu0
  %183 = vmatprep.mubr.bf16.mxu0 0
  %184 = vmatmul.mubr.bf16.gmra.mrb[0].mxu0 %v94
  %v185 = vpop.f32.mrb[0].mxu0
  %v186 = vadd.f32 0.0, %v185
  %v187 = vpop.f32.mrb[0].mxu0
  %v188 = vpop.f32.mrb[0].mxu0
  %v189 = vadd.f32 0.0, %v188
  %v190 = vpop.f32.mrb[0].mxu0
  %191 = vmatprep.mubr.bf16.mxu0 0
  %192 = vmatmul.mubr.bf16.gmra.mrb[0].mxu0 %v97
  %v193 = vpop.f32.mrb[0].mxu0
  %v194 = vadd.f32 0.0, %v193
  %v195 = vpop.f32.mrb[0].mxu0
  %v196 = vpop.f32.mrb[0].mxu0
  %v197 = vadd.f32 0.0, %v196
  %v198 = vpop.f32.mrb[0].mxu0
  %199 = vmatprep.mubr.bf16.mxu0 0
  %200 = vmatmul.mubr.bf16.gmra.mrb[0].mxu0 %v100
  %v201 = vpop.f32.mrb[0].mxu0
  %v202 = vadd.f32 0.0, %v201
  %v203 = vpop.f32.mrb[0].mxu0
  %v204 = vpop.f32.mrb[0].mxu0
  %v205 = vadd.f32 0.0, %v204
  %v206 = vpop.f32.mrb[0].mxu0
  %207 = vmatprep.mubr.bf16.mxu0 0
  %208 = vmatmul.mubr.bf16.gmra.mrb[0].mxu0 %v103
  %v209 = vpop.f32.mrb[0].mxu0
  %v210 = vadd.f32 0.0, %v209
  %v211 = vpop.f32.mrb[0].mxu0
  %v212 = vpop.f32.mrb[0].mxu0
  %v213 = vadd.f32 0.0, %v212
  %v214 = vpop.f32.mrb[0].mxu0
  %215 = vmatprep.mubr.bf16.mxu0 0
  %216 = vmatmul.mubr.bf16.gmra.mrb[0].mxu0 %v106
  %v217 = vpop.f32.mrb[0].mxu0
  %v218 = vadd.f32 0.0, %v217
  %v219 = vpop.f32.mrb[0].mxu0
  %v220 = vpop.f32.mrb[0].mxu0
  %v221 = vadd.f32 0.0, %v220
  %v222 = vpop.f32.mrb[0].mxu0
  %223 = vmatprep.mubr.bf16.mxu0 0
  %224 = vmatmul.mubr.bf16.gmra.mrb[0].mxu0 %v109
  %v225 = vpop.f32.mrb[0].mxu0
  %v226 = vadd.f32 0.0, %v225
  %v227 = vpop.f32.mrb[0].mxu0
  %v228 = vpop.f32.mrb[0].mxu0
  %v229 = vadd.f32 0.0, %v228
  %v230 = vpop.f32.mrb[0].mxu0
  %231 = vmatprep.mubr.bf16.mxu0 0
  %232 = vmatmul.mubr.bf16.gmra.mrb[0].mxu0 %v112
  %v233 = vpop.f32.mrb[0].mxu0
  %v234 = vadd.f32 0.0, %v233
  %v235 = vpop.f32.mrb[0].mxu0
  %v236 = vpop.f32.mrb[0].mxu0
  %v237 = vadd.f32 0.0, %v236
  %v238 = vpop.f32.mrb[0].mxu0
  %239 = vmatprep.mubr.bf16.mxu0 0
  %240 = vmatmul.mubr.bf16.gmra.mrb[0].mxu0 %v115
  %v241 = vpop.f32.mrb[0].mxu0
  %v242 = vadd.f32 0.0, %v241
  %v243 = vpop.f32.mrb[0].mxu0
  %v244 = vpop.f32.mrb[0].mxu0
  %v245 = vadd.f32 0.0, %v244
  %v246 = vpop.f32.mrb[0].mxu0
  %247 = vmatprep.mubr.bf16.mxu0 0
  %248 = vmatmul.mubr.bf16.gmra.mrb[0].mxu0 %v118
  %v249 = vpop.f32.mrb[0].mxu0
  %v250 = vadd.f32 0.0, %v249
  %v251 = vpop.f32.mrb[0].mxu0
  %v252 = vpop.f32.mrb[0].mxu0
  %v253 = vadd.f32 0.0, %v252
  %v254 = vpop.f32.mrb[0].mxu0
  %255 = vmatprep.mubr.bf16.mxu0 0
  %256 = vmatmul.mubr.bf16.gmra.mrb[0].mxu0 %v121
  %v257 = vpop.f32.mrb[0].mxu0
  %v258 = vadd.f32 0.0, %v257
  %v259 = vpop.f32.mrb[0].mxu0
  %v260 = vpop.f32.mrb[0].mxu0
  %v261 = vadd.f32 0.0, %v260
  %v262 = vpop.f32.mrb[0].mxu0
  %263 = vmatprep.mubr.bf16.mxu0 0
  %264 = vmatmul.mubr.bf16.gmra.mrb[0].mxu0 %v124
  %v265 = vpop.f32.mrb[0].mxu0
  %v266 = vadd.f32 0.0, %v265
  %v267 = vpop.f32.mrb[0].mxu0
  %v268 = vpop.f32.mrb[0].mxu0
  %v269 = vadd.f32 0.0, %v268
  %v270 = vpop.f32.mrb[0].mxu0
  %271 = vmatprep.mubr.bf16.mxu0 0
  %272 = vmatmul.mubr.bf16.gmra.mrb[0].mxu0 %v127
  %v273 = vpop.f32.mrb[0].mxu0
  %v274 = vadd.f32 0.0, %v273
  %v275 = vpop.f32.mrb[0].mxu0
  %v276 = vpop.f32.mrb[0].mxu0
  %v277 = vadd.f32 0.0, %v276
  %v278 = vpop.f32.mrb[0].mxu0
  %279 = vmatprep.mubr.bf16.mxu0 0
  %280 = vmatmul.mubr.bf16.gmra.mrb[0].mxu0 %v130
  %v281 = vpop.f32.mrb[0].mxu0
  %v282 = vadd.f32 0.0, %v281
  %v283 = vpop.f32.mrb[0].mxu0
  %v284 = vpop.f32.mrb[0].mxu0
  %v285 = vadd.f32 0.0, %v284
  %v286 = vpop.f32.mrb[0].mxu0
  %287 = vmatprep.mubr.bf16.mxu0 0
  %288 = vmatmul.mubr.bf16.gmra.mrb[0].mxu0 %v133
  %v289 = vpop.f32.mrb[0].mxu0
  %v290 = vadd.f32 0.0, %v289
  %v291 = vpop.f32.mrb[0].mxu0
  %v292 = vpop.f32.mrb[0].mxu0
  %v293 = vadd.f32 0.0, %v292
  %v294 = vpop.f32.mrb[0].mxu0
  %295 = vdwg.mxu0
  %v296 = vlaneseq
  %v297 = vshrl.u32 %v296, 7
  %v298 = vsub.s32 0, %v297
  %v299 = vrot.slane %v21, %v298
  %v300 = vmul.f32 %v170, %v299
  %v301 = vmul.f32 %v173, %v299
  %v302 = vmul.f32 %v178, %v299
  %v303 = vmul.f32 %v181, %v299
  %v304 = vmul.f32 %v186, %v299
  %v305 = vmul.f32 %v189, %v299
  %v306 = vmul.f32 %v194, %v299
  %v307 = vmul.f32 %v197, %v299
  %v308 = vmul.f32 %v202, %v299
  %v309 = vmul.f32 %v205, %v299
  %v310 = vmul.f32 %v210, %v299
  %v311 = vmul.f32 %v213, %v299
  %v312 = vmul.f32 %v218, %v299
  %v313 = vmul.f32 %v221, %v299
  %v314 = vmul.f32 %v226, %v299
  %v315 = vmul.f32 %v229, %v299
  %v316 = vmul.f32 %v234, %v299
  %v317 = vmul.f32 %v237, %v299
  %v318 = vmul.f32 %v242, %v299
  %v319 = vmul.f32 %v245, %v299
  %v320 = vmul.f32 %v250, %v299
  %v321 = vmul.f32 %v253, %v299
  %v322 = vmul.f32 %v258, %v299
  %v323 = vmul.f32 %v261, %v299
  %v324 = vmul.f32 %v266, %v299
  %v325 = vmul.f32 %v269, %v299
  %v326 = vmul.f32 %v274, %v299
  %v327 = vmul.f32 %v277, %v299
  %v328 = vmul.f32 %v282, %v299
  %v329 = vmul.f32 %v285, %v299
  %v330 = vmul.f32 %v290, %v299
  %v331 = vmul.f32 %v293, %v299
  %v332 = vlaneseq
  %v333 = vshrl.u32 %v332, 7
  %v334 = vsub.s32 1, %v333
  %v335 = vrot.slane %v21, %v334
  %v336 = vadd.f32 %v300, %v335
  %v337 = vadd.f32 %v301, %v335
  %v338 = vadd.f32 %v302, %v335
  %v339 = vadd.f32 %v303, %v335
  %v340 = vadd.f32 %v304, %v335
  %v341 = vadd.f32 %v305, %v335
  %v342 = vadd.f32 %v306, %v335
  %v343 = vadd.f32 %v307, %v335
  %v344 = vadd.f32 %v308, %v335
  %v345 = vadd.f32 %v309, %v335
  %v346 = vadd.f32 %v310, %v335
  %v347 = vadd.f32 %v311, %v335
  %v348 = vadd.f32 %v312, %v335
  %v349 = vadd.f32 %v313, %v335
  %v350 = vadd.f32 %v314, %v335
  %v351 = vadd.f32 %v315, %v335
  %v352 = vadd.f32 %v316, %v335
  %v353 = vadd.f32 %v317, %v335
  %v354 = vadd.f32 %v318, %v335
  %v355 = vadd.f32 %v319, %v335
  %v356 = vadd.f32 %v320, %v335
  %v357 = vadd.f32 %v321, %v335
  %v358 = vadd.f32 %v322, %v335
  %v359 = vadd.f32 %v323, %v335
  %v360 = vadd.f32 %v324, %v335
  %v361 = vadd.f32 %v325, %v335
  %v362 = vadd.f32 %v326, %v335
  %v363 = vadd.f32 %v327, %v335
  %v364 = vadd.f32 %v328, %v335
  %v365 = vadd.f32 %v329, %v335
  %v366 = vadd.f32 %v330, %v335
  %v367 = vadd.f32 %v331, %v335
  %vm368 = vcmp.ge.f32.partialorder %v336, 0.0
  %vm369 = vcmp.ge.f32.partialorder %v337, 0.0
  %vm370 = vcmp.ge.f32.partialorder %v338, 0.0
  %vm371 = vcmp.ge.f32.partialorder %v339, 0.0
  %vm372 = vcmp.ge.f32.partialorder %v340, 0.0
  %vm373 = vcmp.ge.f32.partialorder %v341, 0.0
  %vm374 = vcmp.ge.f32.partialorder %v342, 0.0
  %vm375 = vcmp.ge.f32.partialorder %v343, 0.0
  %vm376 = vcmp.ge.f32.partialorder %v344, 0.0
  %vm377 = vcmp.ge.f32.partialorder %v345, 0.0
  %vm378 = vcmp.ge.f32.partialorder %v346, 0.0
  %vm379 = vcmp.ge.f32.partialorder %v347, 0.0
  %vm380 = vcmp.ge.f32.partialorder %v348, 0.0
  %vm381 = vcmp.ge.f32.partialorder %v349, 0.0
  %vm382 = vcmp.ge.f32.partialorder %v350, 0.0
  %vm383 = vcmp.ge.f32.partialorder %v351, 0.0
  %vm384 = vcmp.ge.f32.partialorder %v352, 0.0
  %vm385 = vcmp.ge.f32.partialorder %v353, 0.0
  %vm386 = vcmp.ge.f32.partialorder %v354, 0.0
  %vm387 = vcmp.ge.f32.partialorder %v355, 0.0
  %vm388 = vcmp.ge.f32.partialorder %v356, 0.0
  %vm389 = vcmp.ge.f32.partialorder %v357, 0.0
  %vm390 = vcmp.ge.f32.partialorder %v358, 0.0
  %vm391 = vcmp.ge.f32.partialorder %v359, 0.0
  %vm392 = vcmp.ge.f32.partialorder %v360, 0.0
  %vm393 = vcmp.ge.f32.partialorder %v361, 0.0
  %vm394 = vcmp.ge.f32.partialorder %v362, 0.0
  %vm395 = vcmp.ge.f32.partialorder %v363, 0.0
  %vm396 = vcmp.ge.f32.partialorder %v364, 0.0
  %vm397 = vcmp.ge.f32.partialorder %v365, 0.0
  %vm398 = vcmp.ge.f32.partialorder %v366, 0.0
  %vm399 = vcmp.ge.f32.partialorder %v367, 0.0
  %v400 = vlaneseq
  %v401 = vshrl.u32 %v400, 7
  %v402 = vsub.s32 2, %v401
  %v403 = vrot.slane %v21, %v402
  %v404 = vmul.f32 %v403, %v336
  %v405 = vmul.f32 %v403, %v337
  %v406 = vmul.f32 %v403, %v338
  %v407 = vmul.f32 %v403, %v339
  %v408 = vmul.f32 %v403, %v340
  %v409 = vmul.f32 %v403, %v341
  %v410 = vmul.f32 %v403, %v342
  %v411 = vmul.f32 %v403, %v343
  %v412 = vmul.f32 %v403, %v344
  %v413 = vmul.f32 %v403, %v345
  %v414 = vmul.f32 %v403, %v346
  %v415 = vmul.f32 %v403, %v347
  %v416 = vmul.f32 %v403, %v348
  %v417 = vmul.f32 %v403, %v349
  %v418 = vmul.f32 %v403, %v350
  %v419 = vmul.f32 %v403, %v351
  %v420 = vmul.f32 %v403, %v352
  %v421 = vmul.f32 %v403, %v353
  %v422 = vmul.f32 %v403, %v354
  %v423 = vmul.f32 %v403, %v355
  %v424 = vmul.f32 %v403, %v356
  %v425 = vmul.f32 %v403, %v357
  %v426 = vmul.f32 %v403, %v358
  %v427 = vmul.f32 %v403, %v359
  %v428 = vmul.f32 %v403, %v360
  %v429 = vmul.f32 %v403, %v361
  %v430 = vmul.f32 %v403, %v362
  %v431 = vmul.f32 %v403, %v363
  %v432 = vmul.f32 %v403, %v364
  %v433 = vmul.f32 %v403, %v365
  %v434 = vmul.f32 %v403, %v366
  %v435 = vmul.f32 %v403, %v367
  %v436 = vsel %vm368, %v336, %v404
  %v437 = vsel %vm369, %v337, %v405
  %v438 = vsel %vm370, %v338, %v406
  %v439 = vsel %vm371, %v339, %v407
  %v440 = vsel %vm372, %v340, %v408
  %v441 = vsel %vm373, %v341, %v409
  %v442 = vsel %vm374, %v342, %v410
  %v443 = vsel %vm375, %v343, %v411
  %v444 = vsel %vm376, %v344, %v412
  %v445 = vsel %vm377, %v345, %v413
  %v446 = vsel %vm378, %v346, %v414
  %v447 = vsel %vm379, %v347, %v415
  %v448 = vsel %vm380, %v348, %v416
  %v449 = vsel %vm381, %v349, %v417
  %v450 = vsel %vm382, %v350, %v418
  %v451 = vsel %vm383, %v351, %v419
  %v452 = vsel %vm384, %v352, %v420
  %v453 = vsel %vm385, %v353, %v421
  %v454 = vsel %vm386, %v354, %v422
  %v455 = vsel %vm387, %v355, %v423
  %v456 = vsel %vm388, %v356, %v424
  %v457 = vsel %vm389, %v357, %v425
  %v458 = vsel %vm390, %v358, %v426
  %v459 = vsel %vm391, %v359, %v427
  %v460 = vsel %vm392, %v360, %v428
  %v461 = vsel %vm393, %v361, %v429
  %v462 = vsel %vm394, %v362, %v430
  %v463 = vsel %vm395, %v363, %v431
  %v464 = vsel %vm396, %v364, %v432
  %v465 = vsel %vm397, %v365, %v433
  %v466 = vsel %vm398, %v366, %v434
  %v467 = vsel %vm399, %v367, %v435
  %vm468 = vcmask 523264
  %469 = vst.msk [vmem:[#allocation2] sm:$0xff] %vm468, 0.0
  %vm470 = vcmask 516096
  %471 = vst.msk [vmem:[#allocation2 + $0x8] sm:$0x1] %vm470, 0.0
  %s472 = scalar_lea.vmem [#allocation2], 144
  %473 = vst.msk [vmem:[%s472] sm:$0xff] %vm468, 0.0
  %474 = vst.msk [vmem:[%s472 + $0x8] sm:$0x1] %vm470, 0.0
  %475 = vst.msk [vmem:[#allocation2] sm:$0x1] %vm470, 0.0
  %476 = vst.msk [vmem:[#allocation2 + $0x10] sm:$0x1] %vm470, 0.0
  %477 = vst.msk [vmem:[#allocation2 + $0x20] sm:$0x1] %vm470, 0.0
  %478 = vst.msk [vmem:[#allocation2 + $0x30] sm:$0x1] %vm470, 0.0
  %479 = vst.msk [vmem:[#allocation2 + $0x40] sm:$0x1] %vm470, 0.0
  %480 = vst.msk [vmem:[#allocation2 + $0x50] sm:$0x1] %vm470, 0.0
  %481 = vst.msk [vmem:[#allocation2 + $0x60] sm:$0x1] %vm470, 0.0
  %482 = vst.msk [vmem:[#allocation2 + $0x70] sm:$0x1] %vm470, 0.0
  %483 = vst.msk [vmem:[#allocation2 + $0x80] sm:$0x1] %vm470, 0.0
  %s484 = scalar_lea.vmem [#allocation2], 288
  %485 = vst.msk [vmem:[%s484] sm:$0x1] %vm470, 0.0
  %486 = vst.msk [vmem:[%s484 + $0x10] sm:$0x1] %vm470, 0.0
  %487 = vst.msk [vmem:[%s484 + $0x20] sm:$0x1] %vm470, 0.0
  %488 = vst.msk [vmem:[%s484 + $0x30] sm:$0x1] %vm470, 0.0
  %489 = vst.msk [vmem:[%s484 + $0x40] sm:$0x1] %vm470, 0.0
  %490 = vst.msk [vmem:[%s484 + $0x50] sm:$0x1] %vm470, 0.0
  %491 = vst.msk [vmem:[%s484 + $0x60] sm:$0x1] %vm470, 0.0
  %492 = vst.msk [vmem:[%s484 + $0x70] sm:$0x1] %vm470, 0.0
  %493 = vst.msk [vmem:[%s484 + $0x80] sm:$0x1] %vm470, 0.0
  %s494 = scalar_lea.vmem [#allocation2], 432
  %495 = vst.msk [vmem:[%s494] sm:$0xff] %vm468, %v436
  %496 = vst.msk [vmem:[%s494 + $0x10] sm:$0xff] %vm468, %v437
  %497 = vst.msk [vmem:[%s494 + $0x20] sm:$0xff] %vm468, %v438
  %498 = vst.msk [vmem:[%s494 + $0x30] sm:$0xff] %vm468, %v439
  %499 = vst.msk [vmem:[%s494 + $0x40] sm:$0xff] %vm468, %v440
  %500 = vst.msk [vmem:[%s494 + $0x50] sm:$0xff] %vm468, %v441
  %501 = vst.msk [vmem:[%s494 + $0x60] sm:$0xff] %vm468, %v442
  %502 = vst.msk [vmem:[%s494 + $0x70] sm:$0xff] %vm468, %v443
  %503 = vst.msk [vmem:[%s484 + $0x1] sm:$0xff] %vm468, %v444
  %504 = vst.msk [vmem:[%s484 + $0x11] sm:$0xff] %vm468, %v445
  %505 = vst.msk [vmem:[%s484 + $0x21] sm:$0xff] %vm468, %v446
  %506 = vst.msk [vmem:[%s484 + $0x31] sm:$0xff] %vm468, %v447
  %507 = vst.msk [vmem:[%s484 + $0x41] sm:$0xff] %vm468, %v448
  %508 = vst.msk [vmem:[%s484 + $0x51] sm:$0xff] %vm468, %v449
  %509 = vst.msk [vmem:[%s484 + $0x61] sm:$0xff] %vm468, %v450
  %510 = vst.msk [vmem:[%s484 + $0x71] sm:$0xff] %vm468, %v451
  %s511 = scalar_lea.vmem [#allocation2], 160
  %512 = vst.msk [vmem:[%s511] sm:$0xff] %vm468, %v452
  %513 = vst.msk [vmem:[%s511 + $0x10] sm:$0xff] %vm468, %v453
  %514 = vst.msk [vmem:[%s511 + $0x20] sm:$0xff] %vm468, %v454
  %515 = vst.msk [vmem:[%s511 + $0x30] sm:$0xff] %vm468, %v455
  %516 = vst.msk [vmem:[%s511 + $0x40] sm:$0xff] %vm468, %v456
  %517 = vst.msk [vmem:[%s511 + $0x50] sm:$0xff] %vm468, %v457
  %518 = vst.msk [vmem:[%s511 + $0x60] sm:$0xff] %vm468, %v458
  %519 = vst.msk [vmem:[%s511 + $0x70] sm:$0xff] %vm468, %v459
  %s520 = scalar_lea.vmem [#allocation2], 16
  %521 = vst.msk [vmem:[%s520 + $0x1] sm:$0xff] %vm468, %v460
  %522 = vst.msk [vmem:[%s520 + $0x11] sm:$0xff] %vm468, %v461
  %523 = vst.msk [vmem:[%s520 + $0x21] sm:$0xff] %vm468, %v462
  %524 = vst.msk [vmem:[%s520 + $0x31] sm:$0xff] %vm468, %v463
  %525 = vst.msk [vmem:[%s520 + $0x41] sm:$0xff] %vm468, %v464
  %526 = vst.msk [vmem:[%s520 + $0x51] sm:$0xff] %vm468, %v465
  %527 = vst.msk [vmem:[%s520 + $0x61] sm:$0xff] %vm468, %v466
  %528 = vst.msk [vmem:[%s520 + $0x71] sm:$0xff] %vm468, %v467
  %v529 = vld [vmem:[%s2] sm:$0xff]
  %v530 = vld [vmem:[%s2 + $0x8] sm:$0x1]
  %v531 = vld [vmem:[#allocation2] sm:$0xff]
  %v532 = vld [vmem:[#allocation2 + $0x10] sm:$0xff]
  %v533 = vld [vmem:[#allocation2 + $0x20] sm:$0xff]
  %v534 = vld [vmem:[#allocation2 + $0x30] sm:$0xff]
  %v535 = vld [vmem:[#allocation2 + $0x40] sm:$0xff]
  %v536 = vld [vmem:[#allocation2 + $0x50] sm:$0xff]
  %v537 = vld [vmem:[#allocation2 + $0x60] sm:$0xff]
  %v538 = vld [vmem:[#allocation2 + $0x70] sm:$0xff]
  %v539 = vlaneseq
  %v540 = vshrl.u32 %v539, 7
  %v541 = vsub.s32 0, %v540
  %v542 = vrot.slane %v529, %v541
  %v543 = vmul.f32 %v542, %v531
  %v544 = vmul.f32 %v542, %v532
  %v545 = vmul.f32 %v542, %v533
  %v546 = vmul.f32 %v542, %v534
  %v547 = vmul.f32 %v542, %v535
  %v548 = vmul.f32 %v542, %v536
  %v549 = vmul.f32 %v542, %v537
  %v550 = vmul.f32 %v542, %v538
  %v551 = vld [vmem:[%s472] sm:$0xff]
  %v552 = vld [vmem:[%s472 + $0x10] sm:$0xff]
  %v553 = vld [vmem:[%s472 + $0x20] sm:$0xff]
  %v554 = vld [vmem:[%s472 + $0x30] sm:$0xff]
  %v555 = vld [vmem:[%s472 + $0x40] sm:$0xff]
  %v556 = vld [vmem:[%s472 + $0x50] sm:$0xff]
  %v557 = vld [vmem:[%s472 + $0x60] sm:$0xff]
  %v558 = vld [vmem:[%s472 + $0x70] sm:$0xff]
  %v559 = vlaneseq
  %v560 = vshrl.u32 %v559, 7
  %v561 = vsub.s32 1, %v560
  %v562 = vrot.slane %v529, %v561
  %v563 = vmul.f32 %v562, %v551
  %v564 = vmul.f32 %v562, %v552
  %v565 = vmul.f32 %v562, %v553
  %v566 = vmul.f32 %v562, %v554
  %v567 = vmul.f32 %v562, %v555
  %v568 = vmul.f32 %v562, %v556
  %v569 = vmul.f32 %v562, %v557
  %v570 = vmul.f32 %v562, %v558
  %v571 = vadd.f32 %v543, %v563
  %v572 = vadd.f32 %v544, %v564
  %v573 = vadd.f32 %v545, %v565
  %v574 = vadd.f32 %v546, %v566
  %v575 = vadd.f32 %v547, %v567
  %v576 = vadd.f32 %v548, %v568
  %v577 = vadd.f32 %v549, %v569
  %v578 = vadd.f32 %v550, %v570
  %v579 = vld [vmem:[#allocation2 + $0x1] sm:$0xff]
  %v580 = vld [vmem:[#allocation2 + $0x11] sm:$0xff]
  %v581 = vld [vmem:[#allocation2 + $0x21] sm:$0xff]
  %v582 = vld [vmem:[#allocation2 + $0x31] sm:$0xff]
  %v583 = vld [vmem:[#allocation2 + $0x41] sm:$0xff]
  %v584 = vld [vmem:[#allocation2 + $0x51] sm:$0xff]
  %v585 = vld [vmem:[#allocation2 + $0x61] sm:$0xff]
  %v586 = vld [vmem:[#allocation2 + $0x71] sm:$0xff]
  %v587 = vlaneseq
  %v588 = vshrl.u32 %v587, 7
  %v589 = vsub.s32 2, %v588
  %v590 = vrot.slane %v529, %v589
  %v591 = vmul.f32 %v590, %v579
  %v592 = vmul.f32 %v590, %v580
  %v593 = vmul.f32 %v590, %v581
  %v594 = vmul.f32 %v590, %v582
  %v595 = vmul.f32 %v590, %v583
  %v596 = vmul.f32 %v590, %v584
  %v597 = vmul.f32 %v590, %v585
  %v598 = vmul.f32 %v590, %v586
  %v599 = vadd.f32 %v571, %v591
  %v600 = vadd.f32 %v572, %v592
  %v601 = vadd.f32 %v573, %v593
  %v602 = vadd.f32 %v574, %v594
  %v603 = vadd.f32 %v575, %v595
  %v604 = vadd.f32 %v576, %v596
  %v605 = vadd.f32 %v577, %v597
  %v606 = vadd.f32 %v578, %v598
  %v607 = vld [vmem:[%s484] sm:$0xff]
  %v608 = vld [vmem:[%s484 + $0x10] sm:$0xff]
  %v609 = vld [vmem:[%s484 + $0x20] sm:$0xff]
  %v610 = vld [vmem:[%s484 + $0x30] sm:$0xff]
  %v611 = vld [vmem:[%s484 + $0x40] sm:$0xff]
  %v612 = vld [vmem:[%s484 + $0x50] sm:$0xff]
  %v613 = vld [vmem:[%s484 + $0x60] sm:$0xff]
  %v614 = vld [vmem:[%s484 + $0x70] sm:$0xff]
  %v615 = vlaneseq
  %v616 = vshrl.u32 %v615, 7
  %v617 = vsub.s32 3, %v616
  %v618 = vrot.slane %v529, %v617
  %v619 = vmul.f32 %v618, %v607
  %v620 = vmul.f32 %v618, %v608
  %v621 = vmul.f32 %v618, %v609
  %v622 = vmul.f32 %v618, %v610
  %v623 = vmul.f32 %v618, %v611
  %v624 = vmul.f32 %v618, %v612
  %v625 = vmul.f32 %v618, %v613
  %v626 = vmul.f32 %v618, %v614
  %v627 = vadd.f32 %v599, %v619
  %v628 = vadd.f32 %v600, %v620
  %v629 = vadd.f32 %v601, %v621
  %v630 = vadd.f32 %v602, %v622
  %v631 = vadd.f32 %v603, %v623
  %v632 = vadd.f32 %v604, %v624
  %v633 = vadd.f32 %v605, %v625
  %v634 = vadd.f32 %v606, %v626
  %v635 = vld [vmem:[%s494] sm:$0xff]
  %v636 = vld [vmem:[%s494 + $0x10] sm:$0xff]
  %v637 = vld [vmem:[%s494 + $0x20] sm:$0xff]
  %v638 = vld [vmem:[%s494 + $0x30] sm:$0xff]
  %v639 = vld [vmem:[%s494 + $0x40] sm:$0xff]
  %v640 = vld [vmem:[%s494 + $0x50] sm:$0xff]
  %v641 = vld [vmem:[%s494 + $0x60] sm:$0xff]
  %v642 = vld [vmem:[%s494 + $0x70] sm:$0xff]
  %v643 = vlaneseq
  %v644 = vshrl.u32 %v643, 7
  %v645 = vsub.s32 4, %v644
  %v646 = vrot.slane %v529, %v645
  %v647 = vmul.f32 %v646, %v635
  %v648 = vmul.f32 %v646, %v636
  %v649 = vmul.f32 %v646, %v637
  %v650 = vmul.f32 %v646, %v638
  %v651 = vmul.f32 %v646, %v639
  %v652 = vmul.f32 %v646, %v640
  %v653 = vmul.f32 %v646, %v641
  %v654 = vmul.f32 %v646, %v642
  %v655 = vadd.f32 %v627, %v647
  %v656 = vadd.f32 %v628, %v648
  %v657 = vadd.f32 %v629, %v649
  %v658 = vadd.f32 %v630, %v650
  %v659 = vadd.f32 %v631, %v651
  %v660 = vadd.f32 %v632, %v652
  %v661 = vadd.f32 %v633, %v653
  %v662 = vadd.f32 %v634, %v654
  %v663 = vld [vmem:[%s484 + $0x1] sm:$0xff]
  %v664 = vld [vmem:[%s484 + $0x11] sm:$0xff]
  %v665 = vld [vmem:[%s484 + $0x21] sm:$0xff]
  %v666 = vld [vmem:[%s484 + $0x31] sm:$0xff]
  %v667 = vld [vmem:[%s484 + $0x41] sm:$0xff]
  %v668 = vld [vmem:[%s484 + $0x51] sm:$0xff]
  %v669 = vld [vmem:[%s484 + $0x61] sm:$0xff]
  %v670 = vld [vmem:[%s484 + $0x71] sm:$0xff]
  %v671 = vlaneseq
  %v672 = vshrl.u32 %v671, 7
  %v673 = vsub.s32 5, %v672
  %v674 = vrot.slane %v529, %v673
  %v675 = vmul.f32 %v674, %v663
  %v676 = vmul.f32 %v674, %v664
  %v677 = vmul.f32 %v674, %v665
  %v678 = vmul.f32 %v674, %v666
  %v679 = vmul.f32 %v674, %v667
  %v680 = vmul.f32 %v674, %v668
  %v681 = vmul.f32 %v674, %v669
  %v682 = vmul.f32 %v674, %v670
  %v683 = vadd.f32 %v655, %v675
  %v684 = vadd.f32 %v656, %v676
  %v685 = vadd.f32 %v657, %v677
  %v686 = vadd.f32 %v658, %v678
  %v687 = vadd.f32 %v659, %v679
  %v688 = vadd.f32 %v660, %v680
  %v689 = vadd.f32 %v661, %v681
  %v690 = vadd.f32 %v662, %v682
  %v691 = vld [vmem:[%s520] sm:$0xff]
  %v692 = vld [vmem:[%s520 + $0x10] sm:$0xff]
  %v693 = vld [vmem:[%s520 + $0x20] sm:$0xff]
  %v694 = vld [vmem:[%s520 + $0x30] sm:$0xff]
  %v695 = vld [vmem:[%s520 + $0x40] sm:$0xff]
  %v696 = vld [vmem:[%s520 + $0x50] sm:$0xff]
  %v697 = vld [vmem:[%s520 + $0x60] sm:$0xff]
  %v698 = vld [vmem:[%s520 + $0x70] sm:$0xff]
  %v699 = vlaneseq
  %v700 = vshrl.u32 %v699, 7
  %v701 = vsub.s32 6, %v700
  %v702 = vrot.slane %v529, %v701
  %v703 = vmul.f32 %v702, %v691
  %v704 = vmul.f32 %v702, %v692
  %v705 = vmul.f32 %v702, %v693
  %v706 = vmul.f32 %v702, %v694
  %v707 = vmul.f32 %v702, %v695
  %v708 = vmul.f32 %v702, %v696
  %v709 = vmul.f32 %v702, %v697
  %v710 = vmul.f32 %v702, %v698
  %v711 = vadd.f32 %v683, %v703
  %v712 = vadd.f32 %v684, %v704
  %v713 = vadd.f32 %v685, %v705
  %v714 = vadd.f32 %v686, %v706
  %v715 = vadd.f32 %v687, %v707
  %v716 = vadd.f32 %v688, %v708
  %v717 = vadd.f32 %v689, %v709
  %v718 = vadd.f32 %v690, %v710
  %v719 = vld [vmem:[%s511] sm:$0xff]
  %v720 = vld [vmem:[%s511 + $0x10] sm:$0xff]
  %v721 = vld [vmem:[%s511 + $0x20] sm:$0xff]
  %v722 = vld [vmem:[%s511 + $0x30] sm:$0xff]
  %v723 = vld [vmem:[%s511 + $0x40] sm:$0xff]
  %v724 = vld [vmem:[%s511 + $0x50] sm:$0xff]
  %v725 = vld [vmem:[%s511 + $0x60] sm:$0xff]
  %v726 = vld [vmem:[%s511 + $0x70] sm:$0xff]
  %v727 = vlaneseq
  %v728 = vshrl.u32 %v727, 7
  %v729 = vsub.s32 7, %v728
  %v730 = vrot.slane %v529, %v729
  %v731 = vmul.f32 %v730, %v719
  %v732 = vmul.f32 %v730, %v720
  %v733 = vmul.f32 %v730, %v721
  %v734 = vmul.f32 %v730, %v722
  %v735 = vmul.f32 %v730, %v723
  %v736 = vmul.f32 %v730, %v724
  %v737 = vmul.f32 %v730, %v725
  %v738 = vmul.f32 %v730, %v726
  %v739 = vadd.f32 %v711, %v731
  %v740 = vadd.f32 %v712, %v732
  %v741 = vadd.f32 %v713, %v733
  %v742 = vadd.f32 %v714, %v734
  %v743 = vadd.f32 %v715, %v735
  %v744 = vadd.f32 %v716, %v736
  %v745 = vadd.f32 %v717, %v737
  %v746 = vadd.f32 %v718, %v738
  %v747 = vld [vmem:[%s520 + $0x1] sm:$0xff]
  %v748 = vld [vmem:[%s520 + $0x11] sm:$0xff]
  %v749 = vld [vmem:[%s520 + $0x21] sm:$0xff]
  %v750 = vld [vmem:[%s520 + $0x31] sm:$0xff]
  %v751 = vld [vmem:[%s520 + $0x41] sm:$0xff]
  %v752 = vld [vmem:[%s520 + $0x51] sm:$0xff]
  %v753 = vld [vmem:[%s520 + $0x61] sm:$0xff]
  %v754 = vld [vmem:[%s520 + $0x71] sm:$0xff]
  %v755 = vlaneseq
  %v756 = vshrl.u32 %v755, 7
  %v757 = vsub.s32 0, %v756
  %v758 = vrot.slane %v530, %v757
  %v759 = vmul.f32 %v758, %v747
  %v760 = vmul.f32 %v758, %v748
  %v761 = vmul.f32 %v758, %v749
  %v762 = vmul.f32 %v758, %v750
  %v763 = vmul.f32 %v758, %v751
  %v764 = vmul.f32 %v758, %v752
  %v765 = vmul.f32 %v758, %v753
  %v766 = vmul.f32 %v758, %v754
  %v767 = vadd.f32 %v739, %v759
  %v768 = vadd.f32 %v740, %v760
  %v769 = vadd.f32 %v741, %v761
  %v770 = vadd.f32 %v742, %v762
  %v771 = vadd.f32 %v743, %v763
  %v772 = vadd.f32 %v744, %v764
  %v773 = vadd.f32 %v745, %v765
  %v774 = vadd.f32 %v746, %v766
  %v775 = vlaneseq
  %v776 = vshrl.u32 %v775, 7
  %v777 = vsub.s32 3, %v776
  %v778 = vrot.slane %v21, %v777
  %v779 = vmul.f32 %v767, %v778
  %v780 = vmul.f32 %v768, %v778
  %v781 = vmul.f32 %v769, %v778
  %v782 = vmul.f32 %v770, %v778
  %v783 = vmul.f32 %v771, %v778
  %v784 = vmul.f32 %v772, %v778
  %v785 = vmul.f32 %v773, %v778
  %v786 = vmul.f32 %v774, %v778
  %v787 = vlaneseq
  %v788 = vshrl.u32 %v787, 7
  %v789 = vsub.s32 4, %v788
  %v790 = vrot.slane %v21, %v789
  %v791 = vadd.f32 %v779, %v790
  %v792 = vadd.f32 %v780, %v790
  %v793 = vadd.f32 %v781, %v790
  %v794 = vadd.f32 %v782, %v790
  %v795 = vadd.f32 %v783, %v790
  %v796 = vadd.f32 %v784, %v790
  %v797 = vadd.f32 %v785, %v790
  %v798 = vadd.f32 %v786, %v790
  %vm799 = vcmp.ge.f32.partialorder %v791, 0.0
  %vm800 = vcmp.ge.f32.partialorder %v792, 0.0
  %vm801 = vcmp.ge.f32.partialorder %v793, 0.0
  %vm802 = vcmp.ge.f32.partialorder %v794, 0.0
  %vm803 = vcmp.ge.f32.partialorder %v795, 0.0
  %vm804 = vcmp.ge.f32.partialorder %v796, 0.0
  %vm805 = vcmp.ge.f32.partialorder %v797, 0.0
  %vm806 = vcmp.ge.f32.partialorder %v798, 0.0
  %v807 = vlaneseq
  %v808 = vshrl.u32 %v807, 7
  %v809 = vsub.s32 5, %v808
  %v810 = vrot.slane %v21, %v809
  %v811 = vmul.f32 %v810, %v791
  %v812 = vmul.f32 %v810, %v792
  %v813 = vmul.f32 %v810, %v793
  %v814 = vmul.f32 %v810, %v794
  %v815 = vmul.f32 %v810, %v795
  %v816 = vmul.f32 %v810, %v796
  %v817 = vmul.f32 %v810, %v797
  %v818 = vmul.f32 %v810, %v798
  %v819 = vsel %vm799, %v791, %v811
  %v820 = vsel %vm800, %v792, %v812
  %v821 = vsel %vm801, %v793, %v813
  %v822 = vsel %vm802, %v794, %v814
  %v823 = vsel %vm803, %v795, %v815
  %v824 = vsel %vm804, %v796, %v816
  %v825 = vsel %vm805, %v797, %v817
  %v826 = vsel %vm806, %v798, %v818
  %v827 = vpack.c.bf16 %v820, %v819
  %v828 = vpack.c.bf16 %v822, %v821
  %v829 = vpack.c.bf16 %v824, %v823
  %v830 = vpack.c.bf16 %v826, %v825
  %v831 = vld [vmem:[%s3] sm:$0xf]
  %v832 = vld [vmem:[%s3 + $0x4] sm:$0xf]
  %v833 = vld [vmem:[%s3 + $0x8] sm:$0xf]
  %v834 = vld [vmem:[%s3 + $0xc] sm:$0xf]
  %v835 = vld [vmem:[%s3 + $0x10] sm:$0xf]
  %v836 = vld [vmem:[%s3 + $0x14] sm:$0xf]
  %v837 = vld [vmem:[%s3 + $0x18] sm:$0xf]
  %v838 = vld [vmem:[%s3 + $0x1c] sm:$0xf]
  %v847 = vunpack.c.l.b16 %v831
  %v848 = vunpack.c.l.b16 %v832
  %v849 = vunpack.c.l.b16 %v833
  %v850 = vunpack.c.l.b16 %v834
  %v851 = vunpack.c.l.b16 %v835
  %v852 = vunpack.c.l.b16 %v836
  %v853 = vunpack.c.l.b16 %v837
  %v854 = vunpack.c.l.b16 %v838
  %v855 = vpack.c.b16 %v848, %v847
  %v856 = vpack.c.b16 %v850, %v849
  %v857 = vpack.c.b16 %v852, %v851
  %v858 = vpack.c.b16 %v854, %v853
  %v864 = vsel %vm468, %v827, 0
  %v867 = vsel %vm468, %v828, 0
  %v870 = vsel %vm468, %v829, 0
  %v873 = vsel %vm468, %v830, 0
  %875 = vmatprep.subr.bf16.mxu0 0
  %876 = vmatpush1.bf16.msra.mxu0 %v855
  %877 = vmatprep.subr.bf16.mxu0 0
  %878 = vmatpush1.bf16.msra.mxu0 %v856
  %879 = vmatprep.subr.bf16.mxu0 0
  %880 = vmatpush1.bf16.msra.mxu0 %v857
  %881 = vmatprep.subr.bf16.mxu0 0
  %882 = vmatpush1.bf16.msra.mxu0 %v858
  %883 = vmatprep.subr.bf16.mxu0 0
  %884 = vmatpush1.bf16.msra.mxu0 0
  %885 = vmatprep.subr.bf16.mxu0 0
  %886 = vmatpush1.bf16.msra.mxu0 0
  %887 = vmatprep.subr.bf16.mxu0 0
  %888 = vmatpush1.bf16.msra.mxu0 0
  %889 = vmatprep.subr.bf16.mxu0 0
  %890 = vmatpush1.bf16.msra.mxu0 0
  %891 = vmatprep.subr.bf16.mxu0 0
  %892 = vmatpush1.bf16.msra.mxu0 0
  %893 = vmatprep.subr.bf16.mxu0 0
  %894 = vmatpush1.bf16.msra.mxu0 0
  %895 = vmatprep.subr.bf16.mxu0 0
  %896 = vmatpush1.bf16.msra.mxu0 0
  %897 = vmatprep.subr.bf16.mxu0 0
  %898 = vmatpush1.bf16.msra.mxu0 0
  %899 = vmatprep.subr.bf16.mxu0 0
  %900 = vmatpush1.bf16.msra.mxu0 0
  %901 = vmatprep.subr.bf16.mxu0 0
  %902 = vmatpush1.bf16.msra.mxu0 0
  %903 = vmatprep.subr.bf16.mxu0 0
  %904 = vmatpush1.bf16.msra.mxu0 0
  %905 = vmatprep.subr.bf16.mxu0 0
  %906 = vmatpush1.bf16.msra.mxu0 0
  %907 = vmatprep.mubr.bf16.mxu0 0
  %908 = vmatmul.mubr.bf16.gmra.mrb[0].mxu0 %v864
  %v909 = vpop.f32.mrb[0].mxu0
  %v910 = vadd.f32 0.0, %v909
  %v911 = vpop.f32.mrb[0].mxu0
  %v912 = vpop.f32.mrb[0].mxu0
  %v913 = vadd.f32 0.0, %v912
  %v914 = vpop.f32.mrb[0].mxu0
  %915 = vmatprep.mubr.bf16.mxu0 0
  %916 = vmatmul.mubr.bf16.gmra.mrb[0].mxu0 %v867
  %v917 = vpop.f32.mrb[0].mxu0
  %v918 = vadd.f32 0.0, %v917
  %v919 = vpop.f32.mrb[0].mxu0
  %v920 = vpop.f32.mrb[0].mxu0
  %v921 = vadd.f32 0.0, %v920
  %v922 = vpop.f32.mrb[0].mxu0
  %923 = vmatprep.mubr.bf16.mxu0 0
  %924 = vmatmul.mubr.bf16.gmra.mrb[0].mxu0 %v870
  %v925 = vpop.f32.mrb[0].mxu0
  %v926 = vadd.f32 0.0, %v925
  %v927 = vpop.f32.mrb[0].mxu0
  %v928 = vpop.f32.mrb[0].mxu0
  %v929 = vadd.f32 0.0, %v928
  %v930 = vpop.f32.mrb[0].mxu0
  %931 = vmatprep.mubr.bf16.mxu0 0
  %932 = vmatmul.mubr.bf16.gmra.mrb[0].mxu0 %v873
  %v933 = vpop.f32.mrb[0].mxu0
  %v934 = vadd.f32 0.0, %v933
  %v935 = vpop.f32.mrb[0].mxu0
  %v936 = vpop.f32.mrb[0].mxu0
  %v937 = vadd.f32 0.0, %v936
  %v938 = vpop.f32.mrb[0].mxu0
  %939 = vdwg.mxu0
  %940 = vst.msk [vmem:[%s5] sm:$0xff] %vm468, %v910
  %941 = vst.msk [vmem:[%s5 + $0x8] sm:$0xff] %vm468, %v913
  %942 = vst.msk [vmem:[%s5 + $0x10] sm:$0xff] %vm468, %v918
  %943 = vst.msk [vmem:[%s5 + $0x18] sm:$0xff] %vm468, %v921
  %944 = vst.msk [vmem:[%s5 + $0x20] sm:$0xff] %vm468, %v926
  %945 = vst.msk [vmem:[%s5 + $0x28] sm:$0xff] %vm468, %v929
  %946 = vst.msk [vmem:[%s5 + $0x30] sm:$0xff] %vm468, %v934
  %947 = vst.msk [vmem:[%s5 + $0x38] sm:$0xff] %vm468, %v937
  // Predicated region
  $region22: #{depth_wise_forward.1} parent=0 // pred_check
    _
  $region23: #{depth_wise_forward.1} parent=0 // pred_check_branch
    %949 = sbr.rel (0) target = $region25
  $region24: #{depth_wise_forward.1} parent=0 // pred_region
    _
  $region25: #{depth_wise_forward.1} parent=0 // pred_fallthru
    _
  // Predicated region
  $region26: #{depth_wise_forward.1} parent=0 // pred_check
    _
  $region27: #{depth_wise_forward.1} parent=0 // pred_check_branch
    %951 = sbr.rel (0) target = $region29
  $region28: #{depth_wise_forward.1} parent=0 // pred_region
    _
  $region29: #{depth_wise_forward.1} parent=0 // pred_fallthru
    _

</llo_original>
